<compile_context>
chip_gen: v5e
topology: v5e:2x2
jax: 0.10.0
libtpu: 0.0.40
codegen_flags: <defaults>
</compile_context>

<pallas_src>
import jax
import jax.numpy as jnp
from jax.experimental import pallas as pl
from jax.experimental.pallas import tpu as pltpu


# bf16 single-buffered weight bytes above which we switch to the tiled path.
_RESIDENT_WEIGHT_BUDGET = 24 * 1024 * 1024


# --------------------------------------------------------------------------
# Kernels
# --------------------------------------------------------------------------
def _mlp_resident_kernel(x_ref, w1_ref, b1_ref, w2_ref, b2_ref, o_ref):
    # Fused per batch-tile: out = relu(x @ W1 + b1) @ W2 + b2
    # x arrives f32 and is cast to bf16 here (VPU, free slot under MXU work);
    # matmuls run on the MXU with f32 accumulation; bias adds in f32.
    xb = x_ref[...].astype(jnp.bfloat16)
    h = jnp.dot(xb, w1_ref[...], preferred_element_type=jnp.float32)
    h = jnp.maximum(h + b1_ref[...], 0.0)          # b1 (1, Dh) broadcasts
    out = jnp.dot(h.astype(jnp.bfloat16), w2_ref[...],
                  preferred_element_type=jnp.float32)
    out = out + b2_ref[...]                        # b2 (1, Do) broadcasts
    o_ref[...] = out.astype(o_ref.dtype)


def _mlp_tiled_kernel(x_ref, w1_ref, b1_ref, w2_ref, b2_ref, o_ref, acc_ref):
    # Fallback for large hidden widths: grid = (batch_tiles, hidden_chunks),
    # hidden chunk axis is the reduction axis (last, "arbitrary").
    # h_j = relu(x @ W1[:, j] + b1[j]);  acc += h_j @ W2[j, :];  finalize +b2.
    j = pl.program_id(1)

    @pl.when(j == 0)
    def _():
        acc_ref[...] = jnp.zeros_like(acc_ref)

    xb = x_ref[...].astype(jnp.bfloat16)
    h = jnp.dot(xb, w1_ref[...], preferred_element_type=jnp.float32)
    h = jnp.maximum(h + b1_ref[...], 0.0)
    acc_ref[...] += jnp.dot(h.astype(jnp.bfloat16), w2_ref[...],
                            preferred_element_type=jnp.float32)

    @pl.when(j == pl.num_programs(1) - 1)
    def _():
        o_ref[...] = (acc_ref[...] + b2_ref[...]).astype(o_ref.dtype)


# --------------------------------------------------------------------------
# Wrapper
# --------------------------------------------------------------------------
def prepare_partial_module_params(w1, b1, w2, b2):
    """One-time 'module init' cast: bf16 weights (MXU-native), f32 biases.
    Hoisted out of the forward so no per-call HBM re-cast pass happens."""
    return (w1.astype(jnp.bfloat16), b1.astype(jnp.float32),
            w2.astype(jnp.bfloat16), b2.astype(jnp.float32))


def _vmem_budget(tb, d_in, d_h_block, d_out, x_bytes, out_bytes,
                 weight_buffers):
    weights = weight_buffers * 2 * (d_in * d_h_block + d_h_block * d_out)
    biases = weight_buffers * 4 * (d_h_block + d_out)
    acts = 2 * tb * d_in * x_bytes + 2 * tb * d_out * out_bytes
    interm = tb * d_h_block * 4 + tb * d_out * 4      # f32 h + f32 out/acc
    total = weights + biases + acts + interm
    # 2x headroom for compiler/pipeline scratch; never the whole v7x 64 MiB.
    return int(min(48 * 1024 * 1024, max(16 * 1024 * 1024, 2 * total)))


def partial_module_forward(x, w1_bf, b1_f32, w2_bf, b2_f32, *,
                           batch_tile=512, hidden_tile=256,
                           out_dtype=jnp.bfloat16, force_tiled=False):
    """Equivalent of PartialModule.forward(x) -> self.gm(x) for the wrapped
    GraphModule (Linear -> ReLU -> Linear)."""
    B, D_in = x.shape
    D_hidden = w1_bf.shape[1]
    D_out = w2_bf.shape[1]

    tb = min(batch_tile, B)
    grid_b = pl.cdiv(B, tb)
    x_bytes = x.dtype.itemsize
    out_bytes = jnp.dtype(out_dtype).itemsize

    weight_bytes = 2 * (D_in * D_hidden + D_hidden * D_out)   # bf16, 1-buffered
    use_resident = (not force_tiled) and weight_bytes <= _RESIDENT_WEIGHT_BUDGET

    cost = pl.CostEstimate(
        flops=2 * B * (D_in * D_hidden + D_hidden * D_out),
        transcendentals=0,
        bytes_accessed=int(B * D_in * x_bytes + weight_bytes
                           + 4 * (D_hidden + D_out) + B * D_out * out_bytes))
    out_shape = jax.ShapeDtypeStruct((B, D_out), out_dtype)

    if use_resident:
        def _call_resident(single_buffer_weights):
            wkw = ({"pipeline_mode": pl.Buffered(1)}
                   if single_buffer_weights else {})
            vmem = _vmem_budget(tb, D_in, D_hidden, D_out, x_bytes, out_bytes,
                                weight_buffers=1 if single_buffer_weights else 2)
            return pl.pallas_call(
                _mlp_resident_kernel,
                out_shape=out_shape,
                grid_spec=pltpu.PrefetchScalarGridSpec(
                    num_scalar_prefetch=0,
                    grid=(grid_b,),
                    in_specs=[
                        # Activations: batch-tiled, pipelined HBM<->VMEM.
                        pl.BlockSpec((tb, D_in), lambda i: (i, 0)),
                        # Weights/biases: constant index -> VMEM-resident,
                        # single-buffered (never re-fetched across tiles).
                        pl.BlockSpec((D_in, D_hidden), lambda i: (0, 0), **wkw),
                        pl.BlockSpec((1, D_hidden), lambda i: (0, 0), **wkw),
                        pl.BlockSpec((D_hidden, D_out), lambda i: (0, 0), **wkw),
                        pl.BlockSpec((1, D_out), lambda i: (0, 0), **wkw),
                    ],
                    out_specs=pl.BlockSpec((tb, D_out), lambda i: (i, 0)),
                ),
                compiler_params=pltpu.CompilerParams(
                    dimension_semantics=("parallel",),
                    vmem_limit_bytes=vmem,
                ),
                cost_estimate=cost,
            )(x, w1_bf, b1_f32, w2_bf, b2_f32)

        try:
            return _call_resident(True)
        except Exception:
            # Installed JAX rejected pipeline_mode / Buffered(1); default
            # double-buffered residents are correct, just use more VMEM.
            return _call_resident(False)

    # ---- K/N-tiled fallback (P3 accumulator) for large hidden widths ----
    th = min(hidden_tile, D_hidden)
    # TODO(synk): ragged D_hidden (not a multiple of the hidden tile) would
    # need masking of the padded W1/W2 chunks; not required at these shapes.
    assert D_hidden % th == 0, "tiled path requires D_hidden % hidden_tile == 0"
    vmem = _vmem_budget(tb, D_in, th, D_out, x_bytes, out_bytes,
                        weight_buffers=2)
    return pl.pallas_call(
        _mlp_tiled_kernel,
        out_shape=out_shape,
        grid_spec=pltpu.PrefetchScalarGridSpec(
            num_scalar_prefetch=0,
            grid=(grid_b, D_hidden // th),
            in_specs=[
                pl.BlockSpec((tb, D_in), lambda i, j: (i, 0)),
                pl.BlockSpec((D_in, th), lambda i, j: (0, j)),
                pl.BlockSpec((1, th), lambda i, j: (0, j)),
                pl.BlockSpec((th, D_out), lambda i, j: (j, 0)),
                pl.BlockSpec((1, D_out), lambda i, j: (0, 0)),
            ],
            out_specs=pl.BlockSpec((tb, D_out), lambda i, j: (i, 0)),
            scratch_shapes=[pltpu.VMEM((tb, D_out), jnp.float32)],
        ),
        compiler_params=pltpu.CompilerParams(
            dimension_semantics=("parallel", "arbitrary"),
            vmem_limit_bytes=vmem,
        ),
        cost_estimate=cost,
    )(x, w1_bf, b1_f32, w2_bf, b2_f32)


# --------------------------------------------------------------------------
# Reference (mirrors the kernel's precision choices)
# --------------------------------------------------------------------------
def _reference(x, w1, b1, w2, b2):
    xb = x.astype(jnp.bfloat16).astype(jnp.float32)
    w1b = w1.astype(jnp.bfloat16).astype(jnp.float32)
    w2b = w2.astype(jnp.bfloat16).astype(jnp.float32)
    h = jnp.maximum(xb @ w1b + b1.astype(jnp.float32), 0.0)
    hb = h.astype(jnp.bfloat16).astype(jnp.float32)
    return hb @ w2b + b2.astype(jnp.float32)


if __name__ == "__main__":
    key = jax.random.PRNGKey(0)
    k_x, k_w1, k_b1, k_w2, k_b2 = jax.random.split(key, 5)

    # Feature dims are multiples of 128 (lane-dense stores, full MXU tiles);
    # B=256 fits a single 512-row-capped batch tile (one grid step).
    B, D_in, D_hidden, D_out = 256, 256, 256, 256

    x = jax.random.normal(k_x, (B, D_in), dtype=jnp.float32)
    w1 = jax.random.normal(k_w1, (D_in, D_hidden), dtype=jnp.float32) * 0.02
    b1 = jax.random.normal(k_b1, (1, D_hidden), dtype=jnp.float32) * 0.01
    w2 = jax.random.normal(k_w2, (D_hidden, D_out), dtype=jnp.float32) * 0.02
    b2 = jax.random.normal(k_b2, (1, D_out), dtype=jnp.float32) * 0.01

    # One-time parameter prep ("module init"), hoisted out of forward.
    params = prepare_partial_module_params(w1, b1, w2, b2)

    ref = _reference(x, w1, b1, w2, b2)
    ref_bf = ref.astype(jnp.bfloat16).astype(jnp.float32)

    # Resident-weight fast path.
    out = partial_module_forward(x, *params)
    out = jax.block_until_ready(out)
    assert out.shape == (B, D_out)
    assert out.dtype == jnp.bfloat16
    err = float(jnp.max(jnp.abs(out.astype(jnp.float32) - ref_bf)))
    assert jnp.allclose(out.astype(jnp.float32), ref_bf,
                        atol=2e-2, rtol=2e-2), err

    # Exercise the K/N-tiled fallback path on the same shapes.
    out_tiled = partial_module_forward(x, *params, force_tiled=True,
                                       hidden_tile=128)
    out_tiled = jax.block_until_ready(out_tiled)
    err_t = float(jnp.max(jnp.abs(out_tiled.astype(jnp.float32) - ref_bf)))
    assert jnp.allclose(out_tiled.astype(jnp.float32), ref_bf,
                        atol=2e-2, rtol=2e-2), err_t

    print("KERNEL_OK")
</pallas_src>

<mosaic_0001>
module attributes {stable_mosaic.version = 11 : i64} {
  func.func @_mlp_resident_kernel(%arg0: i32, %arg1: memref<256x256xf32, #tpu.memory_space<vmem>>, %arg2: memref<256x256xbf16, #tpu.memory_space<vmem>>, %arg3: memref<1x256xf32, #tpu.memory_space<vmem>>, %arg4: memref<256x256xbf16, #tpu.memory_space<vmem>>, %arg5: memref<1x256xf32, #tpu.memory_space<vmem>>, %arg6: memref<256x256xbf16, #tpu.memory_space<vmem>>) attributes {dimension_semantics = [#tpu.dimension_semantics<parallel>], iteration_bounds = array<i64: 1>, scalar_prefetch = 0 : i64, scratch_operands = 0 : i64, tpu.core_type = #tpu.core_type<tc>, window_params = [{transform_indices = @transform_0, window_bounds = array<i64: 256, 256>}, {pipeline_mode = #tpu.pipeline_mode<synchronous>, transform_indices = @transform_1, window_bounds = array<i64: 256, 256>}, {pipeline_mode = #tpu.pipeline_mode<synchronous>, transform_indices = @transform_2, window_bounds = array<i64: 1, 256>}, {pipeline_mode = #tpu.pipeline_mode<synchronous>, transform_indices = @transform_3, window_bounds = array<i64: 256, 256>}, {pipeline_mode = #tpu.pipeline_mode<synchronous>, transform_indices = @transform_4, window_bounds = array<i64: 1, 256>}, {transform_indices = @transform_5, window_bounds = array<i64: 256, 256>}]} {
    %c0 = arith.constant 0 : index
    %c0_0 = arith.constant 0 : index
    %0 = vector.load %arg1[%c0, %c0_0] : memref<256x256xf32, #tpu.memory_space<vmem>>, vector<256x256xf32>
    %1 = arith.truncf %0 : vector<256x256xf32> to vector<256x256xbf16>
    %c0_1 = arith.constant 0 : index
    %c0_2 = arith.constant 0 : index
    %2 = vector.load %arg2[%c0_1, %c0_2] : memref<256x256xbf16, #tpu.memory_space<vmem>>, vector<256x256xbf16>
    %cst = arith.constant dense<0.000000e+00> : vector<256x256xf32>
    %3 = tpu.matmul %1, %2, %cst {dimension_numbers = #tpu.dot_dimension_numbers<[1], [0], [0], [1], [0, 0, 1, 1], [], []>} : vector<256x256xbf16>, vector<256x256xbf16>, vector<256x256xf32> -> vector<256x256xf32>
    %c0_3 = arith.constant 0 : index
    %c0_4 = arith.constant 0 : index
    %4 = vector.load %arg3[%c0_3, %c0_4] : memref<1x256xf32, #tpu.memory_space<vmem>>, vector<1x256xf32>
    %5 = vector.broadcast %4 : vector<1x256xf32> to vector<256x256xf32>
    %6 = arith.addf %3, %5 : vector<256x256xf32>
    %cst_5 = arith.constant 0.000000e+00 : f32
    %7 = vector.broadcast %cst_5 : f32 to vector<256x256xf32>
    %8 = arith.maximumf %6, %7 : vector<256x256xf32>
    %9 = arith.truncf %8 : vector<256x256xf32> to vector<256x256xbf16>
    %c0_6 = arith.constant 0 : index
    %c0_7 = arith.constant 0 : index
    %10 = vector.load %arg4[%c0_6, %c0_7] : memref<256x256xbf16, #tpu.memory_space<vmem>>, vector<256x256xbf16>
    %cst_8 = arith.constant dense<0.000000e+00> : vector<256x256xf32>
    %11 = tpu.matmul %9, %10, %cst_8 {dimension_numbers = #tpu.dot_dimension_numbers<[1], [0], [0], [1], [0, 0, 1, 1], [], []>} : vector<256x256xbf16>, vector<256x256xbf16>, vector<256x256xf32> -> vector<256x256xf32>
    %c0_9 = arith.constant 0 : index
    %c0_10 = arith.constant 0 : index
    %12 = vector.load %arg5[%c0_9, %c0_10] : memref<1x256xf32, #tpu.memory_space<vmem>>, vector<1x256xf32>
    %13 = vector.broadcast %12 : vector<1x256xf32> to vector<256x256xf32>
    %14 = arith.addf %11, %13 : vector<256x256xf32>
    %15 = arith.truncf %14 : vector<256x256xf32> to vector<256x256xbf16>
    %c0_11 = arith.constant 0 : index
    %c0_12 = arith.constant 0 : index
    %16 = vector.load %arg6[%c0_11, %c0_12] : memref<256x256xbf16, #tpu.memory_space<vmem>>, vector<256x256xbf16>
    tpu.vector_store %arg6[%c0_11, %c0_12], %15 {strides = array<i32>} : memref<256x256xbf16, #tpu.memory_space<vmem>>, vector<256x256xbf16>,
    return
  }
  func.func @transform_0(%arg0: i32) -> (i32, i32) {
    %c0_i32 = arith.constant 0 : i32
    %c0_i32_0 = arith.constant 0 : i32
    return %arg0, %c0_i32 : i32, i32
  }
  func.func @transform_1(%arg0: i32) -> (i32, i32) {
    %c0_i32 = arith.constant 0 : i32
    %c0_i32_0 = arith.constant 0 : i32
    %c0_i32_1 = arith.constant 0 : i32
    return %c0_i32, %c0_i32_0 : i32, i32
  }
  func.func @transform_2(%arg0: i32) -> (i32, i32) {
    %c0_i32 = arith.constant 0 : i32
    %c0_i32_0 = arith.constant 0 : i32
    %c0_i32_1 = arith.constant 0 : i32
    return %c0_i32, %c0_i32_0 : i32, i32
  }
  func.func @transform_3(%arg0: i32) -> (i32, i32) {
    %c0_i32 = arith.constant 0 : i32
    %c0_i32_0 = arith.constant 0 : i32
    %c0_i32_1 = arith.constant 0 : i32
    return %c0_i32, %c0_i32_0 : i32, i32
  }
  func.func @transform_4(%arg0: i32) -> (i32, i32) {
    %c0_i32 = arith.constant 0 : i32
    %c0_i32_0 = arith.constant 0 : i32
    %c0_i32_1 = arith.constant 0 : i32
    return %c0_i32, %c0_i32_0 : i32, i32
  }
  func.func @transform_5(%arg0: i32) -> (i32, i32) {
    %c0_i32 = arith.constant 0 : i32
    %c0_i32_0 = arith.constant 0 : i32
    return %arg0, %c0_i32 : i32, i32
  }
}

module attributes {stable_mosaic.version = 11 : i64} {
  func.func @_mlp_resident_kernel(%arg0: i32, %arg1: memref<256x256xf32, #tpu.memory_space<vmem>>, %arg2: memref<256x256xbf16, #tpu.memory_space<vmem>>, %arg3: memref<1x256xf32, #tpu.memory_space<vmem>>, %arg4: memref<256x256xbf16, #tpu.memory_space<vmem>>, %arg5: memref<1x256xf32, #tpu.memory_space<vmem>>, %arg6: memref<256x256xbf16, #tpu.memory_space<vmem>>) attributes {dimension_semantics = [#tpu.dimension_semantics<parallel>], iteration_bounds = array<i64: 1>, scalar_prefetch = 0 : i64, scratch_operands = 0 : i64, tpu.core_type = #tpu.core_type<tc>, window_params = [{transform_indices = @transform_0, window_bounds = array<i64: 256, 256>}, {pipeline_mode = #tpu.pipeline_mode<synchronous>, transform_indices = @transform_1, window_bounds = array<i64: 256, 256>}, {pipeline_mode = #tpu.pipeline_mode<synchronous>, transform_indices = @transform_2, window_bounds = array<i64: 1, 256>}, {pipeline_mode = #tpu.pipeline_mode<synchronous>, transform_indices = @transform_3, window_bounds = array<i64: 256, 256>}, {pipeline_mode = #tpu.pipeline_mode<synchronous>, transform_indices = @transform_4, window_bounds = array<i64: 1, 256>}, {transform_indices = @transform_5, window_bounds = array<i64: 256, 256>}]} {
    %c0 = arith.constant 0 : index
    %c0_0 = arith.constant 0 : index
    %0 = vector.load %arg1[%c0, %c0_0] : memref<256x256xf32, #tpu.memory_space<vmem>>, vector<256x256xf32>
    %1 = arith.truncf %0 : vector<256x256xf32> to vector<256x256xbf16>
    %c0_1 = arith.constant 0 : index
    %c0_2 = arith.constant 0 : index
    %2 = vector.load %arg2[%c0_1, %c0_2] : memref<256x256xbf16, #tpu.memory_space<vmem>>, vector<256x256xbf16>
    %cst = arith.constant dense<0.000000e+00> : vector<256x256xf32>
    %3 = tpu.matmul %1, %2, %cst {dimension_numbers = #tpu.dot_dimension_numbers<[1], [0], [0], [1], [0, 0, 1, 1], [], []>} : vector<256x256xbf16>, vector<256x256xbf16>, vector<256x256xf32> -> vector<256x256xf32>
    %c0_3 = arith.constant 0 : index
    %c0_4 = arith.constant 0 : index
    %4 = vector.load %arg3[%c0_3, %c0_4] : memref<1x256xf32, #tpu.memory_space<vmem>>, vector<1x256xf32>
    %5 = vector.broadcast %4 : vector<1x256xf32> to vector<256x256xf32>
    %6 = arith.addf %3, %5 : vector<256x256xf32>
    %cst_5 = arith.constant 0.000000e+00 : f32
    %7 = vector.broadcast %cst_5 : f32 to vector<256x256xf32>
    %8 = arith.maximumf %6, %7 : vector<256x256xf32>
    %9 = arith.truncf %8 : vector<256x256xf32> to vector<256x256xbf16>
    %c0_6 = arith.constant 0 : index
    %c0_7 = arith.constant 0 : index
    %10 = vector.load %arg4[%c0_6, %c0_7] : memref<256x256xbf16, #tpu.memory_space<vmem>>, vector<256x256xbf16>
    %cst_8 = arith.constant dense<0.000000e+00> : vector<256x256xf32>
    %11 = tpu.matmul %9, %10, %cst_8 {dimension_numbers = #tpu.dot_dimension_numbers<[1], [0], [0], [1], [0, 0, 1, 1], [], []>} : vector<256x256xbf16>, vector<256x256xbf16>, vector<256x256xf32> -> vector<256x256xf32>
    %c0_9 = arith.constant 0 : index
    %c0_10 = arith.constant 0 : index
    %12 = vector.load %arg5[%c0_9, %c0_10] : memref<1x256xf32, #tpu.memory_space<vmem>>, vector<1x256xf32>
    %13 = vector.broadcast %12 : vector<1x256xf32> to vector<256x256xf32>
    %14 = arith.addf %11, %13 : vector<256x256xf32>
    %15 = arith.truncf %14 : vector<256x256xf32> to vector<256x256xbf16>
    %c0_11 = arith.constant 0 : index
    %c0_12 = arith.constant 0 : index
    %16 = vector.load %arg6[%c0_11, %c0_12] : memref<256x256xbf16, #tpu.memory_space<vmem>>, vector<256x256xbf16>
    tpu.vector_store %arg6[%c0_11, %c0_12], %15 {strides = array<i32>} : memref<256x256xbf16, #tpu.memory_space<vmem>>, vector<256x256xbf16>,
    return
  }
  func.func @transform_0(%arg0: i32) -> (i32, i32) {
    %c0_i32 = arith.constant 0 : i32
    %c0_i32_0 = arith.constant 0 : i32
    return %arg0, %c0_i32 : i32, i32
  }
  func.func @transform_1(%arg0: i32) -> (i32, i32) {
    %c0_i32 = arith.constant 0 : i32
    %c0_i32_0 = arith.constant 0 : i32
    %c0_i32_1 = arith.constant 0 : i32
    return %c0_i32, %c0_i32_0 : i32, i32
  }
  func.func @transform_2(%arg0: i32) -> (i32, i32) {
    %c0_i32 = arith.constant 0 : i32
    %c0_i32_0 = arith.constant 0 : i32
    %c0_i32_1 = arith.constant 0 : i32
    return %c0_i32, %c0_i32_0 : i32, i32
  }
  func.func @transform_3(%arg0: i32) -> (i32, i32) {
    %c0_i32 = arith.constant 0 : i32
    %c0_i32_0 = arith.constant 0 : i32
    %c0_i32_1 = arith.constant 0 : i32
    return %c0_i32, %c0_i32_0 : i32, i32
  }
  func.func @transform_4(%arg0: i32) -> (i32, i32) {
    %c0_i32 = arith.constant 0 : i32
    %c0_i32_0 = arith.constant 0 : i32
    %c0_i32_1 = arith.constant 0 : i32
    return %c0_i32, %c0_i32_0 : i32, i32
  }
  func.func @transform_5(%arg0: i32) -> (i32, i32) {
    %c0_i32 = arith.constant 0 : i32
    %c0_i32_0 = arith.constant 0 : i32
    return %arg0, %c0_i32 : i32, i32
  }
}

</mosaic_0001>

<llo_original>
// kernel: tpu_custom_call.1
$region0: #{tpu_custom_call.1}
  #allocation0 [shape = 'u32[]', space=smem, size = 0x4, offset = 0x4, fixed_abs, tag = 'smem constant byte address 0x4 - core index']
  #allocation1 [shape = 'u32[72,128]{1,0:T(1,128)}', space=vmem, size = 0x9000, scoped, tag = 'internal scratch']
  %s0 = inlined_call_operand.hbm [shape: f32[256,256], index: 0, kind: input, shape index: {}]
  %s1 = inlined_call_operand.hbm [shape: bf16[256,256], index: 1, kind: input, shape index: {}]
  %s2 = inlined_call_operand.hbm [shape: f32[1,256], index: 2, kind: input, shape index: {}]
  %s3 = inlined_call_operand.hbm [shape: bf16[256,256], index: 3, kind: input, shape index: {}]
  %s4 = inlined_call_operand.vmem [shape: f32[1,256], index: 4, kind: input, shape index: {}]
  %s5 = inlined_call_operand.hbm [shape: bf16[256,256], index: 5, kind: output, shape index: {}]
  %s6 = sld [smem:[#allocation0]]
  $region46: #{tpu_custom_call.1} parent=0
    _
  %s8 = ssub.s32 1, %s6
  %s9 = scalar_select 0, %s8, %s6
  $region1: #{tpu_custom_call.1} parent=0
    #allocation2 [shape = 'u8[262144]{0}', space=vmem, size = 0x40000, scoped, tag = 'input window, operand 0, single buffered']
    #allocation3 [shape = 's32[1]{0}', space=sflag, size = 0x4, scoped, tag = 'scoped memory for tpu_custom_call.1']
    #allocation4 [shape = 's32[1]{0}', space=sflag, size = 0x4, scoped, tag = 'scoped memory for tpu_custom_call.1']
    #allocation5 [shape = 'u8[131072]{0}', space=vmem, size = 0x20000, scoped, tag = 'input window, operand 1, single buffered']
    #allocation6 [shape = 's32[1]{0}', space=sflag, size = 0x4, scoped, tag = 'scoped memory for tpu_custom_call.1']
    #allocation7 [shape = 'u8[1024]{0}', space=vmem, size = 0x400, scoped, tag = 'input window, operand 2, single buffered']
    #allocation8 [shape = 'u8[131072]{0}', space=vmem, size = 0x20000, scoped, tag = 'input window, operand 3, single buffered']
    #allocation9 [shape = 's32[1]{0}', space=sflag, size = 0x4, scoped, tag = 'scoped memory for tpu_custom_call.1']
    #allocation10 [shape = 'u8[131072]{0}', space=vmem, size = 0x20000, scoped, tag = 'output window, operand 0, single buffered']
    %10 = vsyncpa [#allocation3], 0
    %11 = vsyncpa [#allocation6], 0
    %12 = vsyncpa [#allocation9], 0
    %13 = vsyncpa [#allocation4], 0
    // Predicated region
    $region2: #{tpu_custom_call.1} parent=1 // pred_check
      _
    $region3: #{tpu_custom_call.1} parent=1 // pred_check_branch
      %15 = sbr.rel (0) target = $region5
    $region4: #{tpu_custom_call.1} parent=1 // pred_region
      %17 = vsyncadd [#allocation3], 0
      %s18 = sshll.u32 %s0, 4
      %s19 = int_to_ptr.hbm [resolvable:$true] %s18
      %s20 = sshll.u32 [#allocation2], 4
      %s21 = int_to_ptr.vmem [resolvable:$true] %s20
      %26 = dma.hbm_to_vmem [thread:$0]  %s19, 8192, %s21, [#allocation3], 256, 256, 16
    $region5: #{tpu_custom_call.1} parent=1 // pred_fallthru
      _
    // Predicated region
    $region6: #{tpu_custom_call.1} parent=1 // pred_check
      _
    $region7: #{tpu_custom_call.1} parent=1 // pred_check_branch
      %28 = sbr.rel (0) target = $region9
    $region8: #{tpu_custom_call.1} parent=1 // pred_region
      %30 = vsyncadd [#allocation6], 0
      %s31 = sshll.u32 %s1, 4
      %s32 = int_to_ptr.hbm [resolvable:$true] %s31
      %s33 = sshll.u32 [#allocation5], 4
      %s34 = int_to_ptr.vmem [resolvable:$true] %s33
      %39 = dma.hbm_to_vmem [thread:$0]  %s32, 4096, %s34, [#allocation6], 128, 128, 8
    $region9: #{tpu_custom_call.1} parent=1 // pred_fallthru
      _
    // Predicated region
    $region10: #{tpu_custom_call.1} parent=1 // pred_check
      _
    $region11: #{tpu_custom_call.1} parent=1 // pred_check_branch
      %41 = sbr.rel (0) target = $region13
    $region12: #{tpu_custom_call.1} parent=1 // pred_region
      %43 = vsyncadd [#allocation6], 0
      %s45 = sshll.u32 %s2, 4
      %s46 = int_to_ptr.hbm [resolvable:$true] %s45
      %s47 = sshll.u32 [#allocation7], 4
      %s48 = int_to_ptr.vmem [resolvable:$true] %s47
      %50 = dma.hbm_to_vmem [thread:$0]  %s46, 32, %s48, [#allocation6]
    $region13: #{tpu_custom_call.1} parent=1 // pred_fallthru
      _
    // Predicated region
    $region14: #{tpu_custom_call.1} parent=1 // pred_check
      _
    $region15: #{tpu_custom_call.1} parent=1 // pred_check_branch
      %52 = sbr.rel (0) target = $region17
    $region16: #{tpu_custom_call.1} parent=1 // pred_region
      %54 = vsyncadd [#allocation9], 0
      %s55 = sshll.u32 %s3, 4
      %s56 = int_to_ptr.hbm [resolvable:$true] %s55
      %s57 = sshll.u32 [#allocation8], 4
      %s58 = int_to_ptr.vmem [resolvable:$true] %s57
      %63 = dma.hbm_to_vmem [thread:$0]  %s56, 4096, %s58, [#allocation9], 128, 128, 8
    $region17: #{tpu_custom_call.1} parent=1 // pred_fallthru
      _
    // Predicated region
    $region18: #{tpu_custom_call.1} parent=1 // pred_check
      _
    $region19: #{tpu_custom_call.1} parent=1 // pred_check_branch
      %65 = sbr.rel (0) target = $region21
    $region20: #{tpu_custom_call.1} parent=1 // pred_region
      _
    $region21: #{tpu_custom_call.1} parent=1 // pred_fallthru
      _
    // Predicated region
    $region22: #{tpu_custom_call.1} parent=1 // pred_check
      _
    $region23: #{tpu_custom_call.1} parent=1 // pred_check_branch
      %67 = sbr.rel (0) target = $region25
    $region24: #{tpu_custom_call.1} parent=1 // pred_region
      %69 = dma.done [#allocation3], 8192
    $region25: #{tpu_custom_call.1} parent=1 // pred_fallthru
      _
    // Predicated region
    $region26: #{tpu_custom_call.1} parent=1 // pred_check
      _
    $region27: #{tpu_custom_call.1} parent=1 // pred_check_branch
      %71 = sbr.rel (0) target = $region29
    $region28: #{tpu_custom_call.1} parent=1 // pred_region
      %73 = dma.done [#allocation6], 4096
    $region29: #{tpu_custom_call.1} parent=1 // pred_fallthru
      _
    // Predicated region
    $region30: #{tpu_custom_call.1} parent=1 // pred_check
      _
    $region31: #{tpu_custom_call.1} parent=1 // pred_check_branch
      %75 = sbr.rel (0) target = $region33
    $region32: #{tpu_custom_call.1} parent=1 // pred_region
      %77 = dma.done [#allocation6], 32
    $region33: #{tpu_custom_call.1} parent=1 // pred_fallthru
      _
    // Predicated region
    $region34: #{tpu_custom_call.1} parent=1 // pred_check
      _
    $region35: #{tpu_custom_call.1} parent=1 // pred_check_branch
      %79 = sbr.rel (0) target = $region37
    $region36: #{tpu_custom_call.1} parent=1 // pred_region
      %81 = dma.done [#allocation9], 4096
    $region37: #{tpu_custom_call.1} parent=1 // pred_fallthru
      _
    %v82 = vld [vmem:[#allocation2] sm:$0xff]
    %v83 = vld [vmem:[#allocation2 + $0x8] sm:$0xff]
    %v84 = vld [vmem:[#allocation2 + $0x10] sm:$0xff]
    %v85 = vld [vmem:[#allocation2 + $0x18] sm:$0xff]
    %v86 = vld [vmem:[#allocation2 + $0x20] sm:$0xff]
    %v87 = vld [vmem:[#allocation2 + $0x28] sm:$0xff]
    %v88 = vld [vmem:[#allocation2 + $0x30] sm:$0xff]
    %v89 = vld [vmem:[#allocation2 + $0x38] sm:$0xff]
    %v90 = vld [vmem:[#allocation2 + $0x40] sm:$0xff]
    %v91 = vld [vmem:[#allocation2 + $0x48] sm:$0xff]
    %v92 = vld [vmem:[#allocation2 + $0x50] sm:$0xff]
    %v93 = vld [vmem:[#allocation2 + $0x58] sm:$0xff]
    %v94 = vld [vmem:[#allocation2 + $0x60] sm:$0xff]
    %v95 = vld [vmem:[#allocation2 + $0x68] sm:$0xff]
    %v96 = vld [vmem:[#allocation2 + $0x70] sm:$0xff]
    %v97 = vld [vmem:[#allocation2 + $0x78] sm:$0xff]
    %v98 = vld [vmem:[#allocation2 + $0x80] sm:$0xff]
    %v99 = vld [vmem:[#allocation2 + $0x88] sm:$0xff]
    %v100 = vld [vmem:[#allocation2 + $0x90] sm:$0xff]
    %v101 = vld [vmem:[#allocation2 + $0x98] sm:$0xff]
    %v102 = vld [vmem:[#allocation2 + $0xa0] sm:$0xff]
    %v103 = vld [vmem:[#allocation2 + $0xa8] sm:$0xff]
    %v104 = vld [vmem:[#allocation2 + $0xb0] sm:$0xff]
    %v105 = vld [vmem:[#allocation2 + $0xb8] sm:$0xff]
    %v106 = vld [vmem:[#allocation2 + $0xc0] sm:$0xff]
    %v107 = vld [vmem:[#allocation2 + $0xc8] sm:$0xff]
    %v108 = vld [vmem:[#allocation2 + $0xd0] sm:$0xff]
    %v109 = vld [vmem:[#allocation2 + $0xd8] sm:$0xff]
    %v110 = vld [vmem:[#allocation2 + $0xe0] sm:$0xff]
    %v111 = vld [vmem:[#allocation2 + $0xe8] sm:$0xff]
    %v112 = vld [vmem:[#allocation2 + $0xf0] sm:$0xff]
    %v113 = vld [vmem:[#allocation2 + $0xf8] sm:$0xff]
    %v114 = vld [vmem:[#allocation2 + $0x100] sm:$0xff]
    %v115 = vld [vmem:[#allocation2 + $0x108] sm:$0xff]
    %v116 = vld [vmem:[#allocation2 + $0x110] sm:$0xff]
    %v117 = vld [vmem:[#allocation2 + $0x118] sm:$0xff]
    %v118 = vld [vmem:[#allocation2 + $0x120] sm:$0xff]
    %v119 = vld [vmem:[#allocation2 + $0x128] sm:$0xff]
    %v120 = vld [vmem:[#allocation2 + $0x130] sm:$0xff]
    %v121 = vld [vmem:[#allocation2 + $0x138] sm:$0xff]
    %v122 = vld [vmem:[#allocation2 + $0x140] sm:$0xff]
    %v123 = vld [vmem:[#allocation2 + $0x148] sm:$0xff]
    %v124 = vld [vmem:[#allocation2 + $0x150] sm:$0xff]
    %v125 = vld [vmem:[#allocation2 + $0x158] sm:$0xff]
    %v126 = vld [vmem:[#allocation2 + $0x160] sm:$0xff]
    %v127 = vld [vmem:[#allocation2 + $0x168] sm:$0xff]
    %v128 = vld [vmem:[#allocation2 + $0x170] sm:$0xff]
    %v129 = vld [vmem:[#allocation2 + $0x178] sm:$0xff]
    %v130 = vld [vmem:[#allocation2 + $0x180] sm:$0xff]
    %v131 = vld [vmem:[#allocation2 + $0x188] sm:$0xff]
    %v132 = vld [vmem:[#allocation2 + $0x190] sm:$0xff]
    %v133 = vld [vmem:[#allocation2 + $0x198] sm:$0xff]
    %v134 = vld [vmem:[#allocation2 + $0x1a0] sm:$0xff]
    %v135 = vld [vmem:[#allocation2 + $0x1a8] sm:$0xff]
    %v136 = vld [vmem:[#allocation2 + $0x1b0] sm:$0xff]
    %v137 = vld [vmem:[#allocation2 + $0x1b8] sm:$0xff]
    %v138 = vld [vmem:[#allocation2 + $0x1c0] sm:$0xff]
    %v139 = vld [vmem:[#allocation2 + $0x1c8] sm:$0xff]
    %v140 = vld [vmem:[#allocation2 + $0x1d0] sm:$0xff]
    %v141 = vld [vmem:[#allocation2 + $0x1d8] sm:$0xff]
    %v142 = vld [vmem:[#allocation2 + $0x1e0] sm:$0xff]
    %v143 = vld [vmem:[#allocation2 + $0x1e8] sm:$0xff]
    %v144 = vld [vmem:[#allocation2 + $0x1f0] sm:$0xff]
    %v145 = vld [vmem:[#allocation2 + $0x1f8] sm:$0xff]
    %v146 = vpack.c.bf16 %v84, %v82
    %v147 = vpack.c.bf16 %v85, %v83
    %v148 = vpack.c.bf16 %v88, %v86
    %v149 = vpack.c.bf16 %v89, %v87
    %v150 = vpack.c.bf16 %v92, %v90
    %v151 = vpack.c.bf16 %v93, %v91
    %v152 = vpack.c.bf16 %v96, %v94
    %v153 = vpack.c.bf16 %v97, %v95
    %v154 = vpack.c.bf16 %v100, %v98
    %v155 = vpack.c.bf16 %v101, %v99
    %v156 = vpack.c.bf16 %v104, %v102
    %v157 = vpack.c.bf16 %v105, %v103
    %v158 = vpack.c.bf16 %v108, %v106
    %v159 = vpack.c.bf16 %v109, %v107
    %v160 = vpack.c.bf16 %v112, %v110
    %v161 = vpack.c.bf16 %v113, %v111
    %v162 = vpack.c.bf16 %v116, %v114
    %v163 = vpack.c.bf16 %v117, %v115
    %v164 = vpack.c.bf16 %v120, %v118
    %v165 = vpack.c.bf16 %v121, %v119
    %v166 = vpack.c.bf16 %v124, %v122
    %v167 = vpack.c.bf16 %v125, %v123
    %v168 = vpack.c.bf16 %v128, %v126
    %v169 = vpack.c.bf16 %v129, %v127
    %v170 = vpack.c.bf16 %v132, %v130
    %v171 = vpack.c.bf16 %v133, %v131
    %v172 = vpack.c.bf16 %v136, %v134
    %v173 = vpack.c.bf16 %v137, %v135
    %v174 = vpack.c.bf16 %v140, %v138
    %v175 = vpack.c.bf16 %v141, %v139
    %v176 = vpack.c.bf16 %v144, %v142
    %v177 = vpack.c.bf16 %v145, %v143
    %v178 = vld [vmem:[#allocation5] sm:$0xff]
    %v179 = vld [vmem:[#allocation5 + $0x8] sm:$0xff]
    %v180 = vld [vmem:[#allocation5 + $0x10] sm:$0xff]
    %v181 = vld [vmem:[#allocation5 + $0x18] sm:$0xff]
    %v182 = vld [vmem:[#allocation5 + $0x20] sm:$0xff]
    %v183 = vld [vmem:[#allocation5 + $0x28] sm:$0xff]
    %v184 = vld [vmem:[#allocation5 + $0x30] sm:$0xff]
    %v185 = vld [vmem:[#allocation5 + $0x38] sm:$0xff]
    %v186 = vld [vmem:[#allocation5 + $0x40] sm:$0xff]
    %v187 = vld [vmem:[#allocation5 + $0x48] sm:$0xff]
    %v188 = vld [vmem:[#allocation5 + $0x50] sm:$0xff]
    %v189 = vld [vmem:[#allocation5 + $0x58] sm:$0xff]
    %v190 = vld [vmem:[#allocation5 + $0x60] sm:$0xff]
    %v191 = vld [vmem:[#allocation5 + $0x68] sm:$0xff]
    %v192 = vld [vmem:[#allocation5 + $0x70] sm:$0xff]
    %v193 = vld [vmem:[#allocation5 + $0x78] sm:$0xff]
    %v194 = vld [vmem:[#allocation5 + $0x80] sm:$0xff]
    %v195 = vld [vmem:[#allocation5 + $0x88] sm:$0xff]
    %v196 = vld [vmem:[#allocation5 + $0x90] sm:$0xff]
    %v197 = vld [vmem:[#allocation5 + $0x98] sm:$0xff]
    %v198 = vld [vmem:[#allocation5 + $0xa0] sm:$0xff]
    %v199 = vld [vmem:[#allocation5 + $0xa8] sm:$0xff]
    %v200 = vld [vmem:[#allocation5 + $0xb0] sm:$0xff]
    %v201 = vld [vmem:[#allocation5 + $0xb8] sm:$0xff]
    %v202 = vld [vmem:[#allocation5 + $0xc0] sm:$0xff]
    %v203 = vld [vmem:[#allocation5 + $0xc8] sm:$0xff]
    %v204 = vld [vmem:[#allocation5 + $0xd0] sm:$0xff]
    %v205 = vld [vmem:[#allocation5 + $0xd8] sm:$0xff]
    %v206 = vld [vmem:[#allocation5 + $0xe0] sm:$0xff]
    %v207 = vld [vmem:[#allocation5 + $0xe8] sm:$0xff]
    %v208 = vld [vmem:[#allocation5 + $0xf0] sm:$0xff]
    %v209 = vld [vmem:[#allocation5 + $0xf8] sm:$0xff]
    %v210 = vld [vmem:[#allocation7] sm:$0x3]
    %v212 = vperm.slane %v210, 0
    %v213 = vperm.slane %v210, 1
    %v248 = vunpack.c.l.b16 %v178
    %v249 = vunpack.c.h.b16 %v178
    %v250 = vunpack.c.l.b16 %v179
    %v251 = vunpack.c.h.b16 %v179
    %v252 = vunpack.c.l.b16 %v180
    %v253 = vunpack.c.h.b16 %v180
    %v254 = vunpack.c.l.b16 %v181
    %v255 = vunpack.c.h.b16 %v181
    %v256 = vunpack.c.l.b16 %v182
    %v257 = vunpack.c.h.b16 %v182
    %v258 = vunpack.c.l.b16 %v183
    %v259 = vunpack.c.h.b16 %v183
    %v260 = vunpack.c.l.b16 %v184
    %v261 = vunpack.c.h.b16 %v184
    %v262 = vunpack.c.l.b16 %v185
    %v263 = vunpack.c.h.b16 %v185
    %v264 = vunpack.c.l.b16 %v186
    %v265 = vunpack.c.h.b16 %v186
    %v266 = vunpack.c.l.b16 %v187
    %v267 = vunpack.c.h.b16 %v187
    %v268 = vunpack.c.l.b16 %v188
    %v269 = vunpack.c.h.b16 %v188
    %v270 = vunpack.c.l.b16 %v189
    %v271 = vunpack.c.h.b16 %v189
    %v272 = vunpack.c.l.b16 %v190
    %v273 = vunpack.c.h.b16 %v190
    %v274 = vunpack.c.l.b16 %v191
    %v275 = vunpack.c.h.b16 %v191
    %v276 = vunpack.c.l.b16 %v192
    %v277 = vunpack.c.h.b16 %v192
    %v278 = vunpack.c.l.b16 %v193
    %v279 = vunpack.c.h.b16 %v193
    %v280 = vunpack.c.l.b16 %v194
    %v281 = vunpack.c.h.b16 %v194
    %v282 = vunpack.c.l.b16 %v195
    %v283 = vunpack.c.h.b16 %v195
    %v284 = vunpack.c.l.b16 %v196
    %v285 = vunpack.c.h.b16 %v196
    %v286 = vunpack.c.l.b16 %v197
    %v287 = vunpack.c.h.b16 %v197
    %v288 = vunpack.c.l.b16 %v198
    %v289 = vunpack.c.h.b16 %v198
    %v290 = vunpack.c.l.b16 %v199
    %v291 = vunpack.c.h.b16 %v199
    %v292 = vunpack.c.l.b16 %v200
    %v293 = vunpack.c.h.b16 %v200
    %v294 = vunpack.c.l.b16 %v201
    %v295 = vunpack.c.h.b16 %v201
    %v296 = vunpack.c.l.b16 %v202
    %v297 = vunpack.c.h.b16 %v202
    %v298 = vunpack.c.l.b16 %v203
    %v299 = vunpack.c.h.b16 %v203
    %v300 = vunpack.c.l.b16 %v204
    %v301 = vunpack.c.h.b16 %v204
    %v302 = vunpack.c.l.b16 %v205
    %v303 = vunpack.c.h.b16 %v205
    %v304 = vunpack.c.l.b16 %v206
    %v305 = vunpack.c.h.b16 %v206
    %v306 = vunpack.c.l.b16 %v207
    %v307 = vunpack.c.h.b16 %v207
    %v308 = vunpack.c.l.b16 %v208
    %v309 = vunpack.c.h.b16 %v208
    %v310 = vunpack.c.l.b16 %v209
    %v311 = vunpack.c.h.b16 %v209
    %v312 = vpack.c.b16 %v250, %v248
    %v313 = vpack.c.b16 %v251, %v249
    %v314 = vpack.c.b16 %v254, %v252
    %v315 = vpack.c.b16 %v255, %v253
    %v316 = vpack.c.b16 %v258, %v256
    %v317 = vpack.c.b16 %v259, %v257
    %v318 = vpack.c.b16 %v262, %v260
    %v319 = vpack.c.b16 %v263, %v261
    %v320 = vpack.c.b16 %v266, %v264
    %v321 = vpack.c.b16 %v267, %v265
    %v322 = vpack.c.b16 %v270, %v268
    %v323 = vpack.c.b16 %v271, %v269
    %v324 = vpack.c.b16 %v274, %v272
    %v325 = vpack.c.b16 %v275, %v273
    %v326 = vpack.c.b16 %v278, %v276
    %v327 = vpack.c.b16 %v279, %v277
    %v328 = vpack.c.b16 %v282, %v280
    %v329 = vpack.c.b16 %v283, %v281
    %v330 = vpack.c.b16 %v286, %v284
    %v331 = vpack.c.b16 %v287, %v285
    %v332 = vpack.c.b16 %v290, %v288
    %v333 = vpack.c.b16 %v291, %v289
    %v334 = vpack.c.b16 %v294, %v292
    %v335 = vpack.c.b16 %v295, %v293
    %v336 = vpack.c.b16 %v298, %v296
    %v337 = vpack.c.b16 %v299, %v297
    %v338 = vpack.c.b16 %v302, %v300
    %v339 = vpack.c.b16 %v303, %v301
    %v340 = vpack.c.b16 %v306, %v304
    %v341 = vpack.c.b16 %v307, %v305
    %v342 = vpack.c.b16 %v310, %v308
    %v343 = vpack.c.b16 %v311, %v309
    %376 = vmatpush.bf16.msra.mxu0 %v326
    %377 = vmatpush.bf16.msra.mxu0 %v324
    %378 = vmatpush.bf16.msra.mxu0 %v322
    %379 = vmatpush.bf16.msra.mxu0 %v320
    %380 = vmatpush.bf16.msra.mxu0 %v318
    %381 = vmatpush.bf16.msra.mxu0 %v316
    %382 = vmatpush.bf16.msra.mxu0 %v314
    %383 = vmatpush.bf16.msra.mxu0 %v312
    %384 = vmatmul.bf16.gmra.mxu0 %v146
    %v385 = vpop.f32.mrf.mxu0
    %v386 = vadd.f32 %v212, %v385
    %v387 = vpop.f32.mrf.mxu0
    %v388 = vadd.f32 %v212, %v387
    %389 = vmatmul.bf16.gmra.mxu0 %v148
    %v390 = vpop.f32.mrf.mxu0
    %v391 = vadd.f32 %v212, %v390
    %v392 = vpop.f32.mrf.mxu0
    %v393 = vadd.f32 %v212, %v392
    %394 = vmatmul.bf16.gmra.mxu0 %v150
    %v395 = vpop.f32.mrf.mxu0
    %v396 = vadd.f32 %v212, %v395
    %v397 = vpop.f32.mrf.mxu0
    %v398 = vadd.f32 %v212, %v397
    %399 = vmatmul.bf16.gmra.mxu0 %v152
    %v400 = vpop.f32.mrf.mxu0
    %v401 = vadd.f32 %v212, %v400
    %v402 = vpop.f32.mrf.mxu0
    %v403 = vadd.f32 %v212, %v402
    %404 = vmatmul.bf16.gmra.mxu0 %v154
    %v405 = vpop.f32.mrf.mxu0
    %v406 = vadd.f32 %v212, %v405
    %v407 = vpop.f32.mrf.mxu0
    %v408 = vadd.f32 %v212, %v407
    %409 = vmatmul.bf16.gmra.mxu0 %v156
    %v410 = vpop.f32.mrf.mxu0
    %v411 = vadd.f32 %v212, %v410
    %v412 = vpop.f32.mrf.mxu0
    %v413 = vadd.f32 %v212, %v412
    %414 = vmatmul.bf16.gmra.mxu0 %v158
    %v415 = vpop.f32.mrf.mxu0
    %v416 = vadd.f32 %v212, %v415
    %v417 = vpop.f32.mrf.mxu0
    %v418 = vadd.f32 %v212, %v417
    %419 = vmatmul.bf16.gmra.mxu0 %v160
    %v420 = vpop.f32.mrf.mxu0
    %v421 = vadd.f32 %v212, %v420
    %v422 = vpop.f32.mrf.mxu0
    %v423 = vadd.f32 %v212, %v422
    %424 = vmatmul.bf16.gmra.mxu0 %v162
    %v425 = vpop.f32.mrf.mxu0
    %v426 = vadd.f32 %v212, %v425
    %v427 = vpop.f32.mrf.mxu0
    %v428 = vadd.f32 %v212, %v427
    %429 = vmatmul.bf16.gmra.mxu0 %v164
    %v430 = vpop.f32.mrf.mxu0
    %v431 = vadd.f32 %v212, %v430
    %v432 = vpop.f32.mrf.mxu0
    %v433 = vadd.f32 %v212, %v432
    %434 = vmatmul.bf16.gmra.mxu0 %v166
    %v435 = vpop.f32.mrf.mxu0
    %v436 = vadd.f32 %v212, %v435
    %v437 = vpop.f32.mrf.mxu0
    %v438 = vadd.f32 %v212, %v437
    %439 = vmatmul.bf16.gmra.mxu0 %v168
    %v440 = vpop.f32.mrf.mxu0
    %v441 = vadd.f32 %v212, %v440
    %v442 = vpop.f32.mrf.mxu0
    %v443 = vadd.f32 %v212, %v442
    %444 = vmatmul.bf16.gmra.mxu0 %v170
    %v445 = vpop.f32.mrf.mxu0
    %v446 = vadd.f32 %v212, %v445
    %v447 = vpop.f32.mrf.mxu0
    %v448 = vadd.f32 %v212, %v447
    %449 = vmatmul.bf16.gmra.mxu0 %v172
    %v450 = vpop.f32.mrf.mxu0
    %v451 = vadd.f32 %v212, %v450
    %v452 = vpop.f32.mrf.mxu0
    %v453 = vadd.f32 %v212, %v452
    %454 = vmatmul.bf16.gmra.mxu0 %v174
    %v455 = vpop.f32.mrf.mxu0
    %v456 = vadd.f32 %v212, %v455
    %v457 = vpop.f32.mrf.mxu0
    %v458 = vadd.f32 %v212, %v457
    %459 = vmatmul.bf16.gmra.mxu0 %v176
    %v460 = vpop.f32.mrf.mxu0
    %v461 = vadd.f32 %v212, %v460
    %v462 = vpop.f32.mrf.mxu0
    %v463 = vadd.f32 %v212, %v462
    %464 = vdwg.mxu0
    %465 = vmatpush.bf16.msra.mxu0 %v342
    %466 = vmatpush.bf16.msra.mxu0 %v340
    %467 = vmatpush.bf16.msra.mxu0 %v338
    %468 = vmatpush.bf16.msra.mxu0 %v336
    %469 = vmatpush.bf16.msra.mxu0 %v334
    %470 = vmatpush.bf16.msra.mxu0 %v332
    %471 = vmatpush.bf16.msra.mxu0 %v330
    %472 = vmatpush.bf16.msra.mxu0 %v328
    %473 = vmatmul.bf16.gmra.mxu0 %v147
    %v474 = vpop.f32.mrf.mxu0
    %v475 = vadd.f32 %v386, %v474
    %v476 = vpop.f32.mrf.mxu0
    %v477 = vadd.f32 %v388, %v476
    %478 = vmatmul.bf16.gmra.mxu0 %v149
    %v479 = vpop.f32.mrf.mxu0
    %v480 = vadd.f32 %v391, %v479
    %v481 = vpop.f32.mrf.mxu0
    %v482 = vadd.f32 %v393, %v481
    %483 = vmatmul.bf16.gmra.mxu0 %v151
    %v484 = vpop.f32.mrf.mxu0
    %v485 = vadd.f32 %v396, %v484
    %v486 = vpop.f32.mrf.mxu0
    %v487 = vadd.f32 %v398, %v486
    %488 = vmatmul.bf16.gmra.mxu0 %v153
    %v489 = vpop.f32.mrf.mxu0
    %v490 = vadd.f32 %v401, %v489
    %v491 = vpop.f32.mrf.mxu0
    %v492 = vadd.f32 %v403, %v491
    %493 = vmatmul.bf16.gmra.mxu0 %v155
    %v494 = vpop.f32.mrf.mxu0
    %v495 = vadd.f32 %v406, %v494
    %v496 = vpop.f32.mrf.mxu0
    %v497 = vadd.f32 %v408, %v496
    %498 = vmatmul.bf16.gmra.mxu0 %v157
    %v499 = vpop.f32.mrf.mxu0
    %v500 = vadd.f32 %v411, %v499
    %v501 = vpop.f32.mrf.mxu0
    %v502 = vadd.f32 %v413, %v501
    %503 = vmatmul.bf16.gmra.mxu0 %v159
    %v504 = vpop.f32.mrf.mxu0
    %v505 = vadd.f32 %v416, %v504
    %v506 = vpop.f32.mrf.mxu0
    %v507 = vadd.f32 %v418, %v506
    %508 = vmatmul.bf16.gmra.mxu0 %v161
    %v509 = vpop.f32.mrf.mxu0
    %v510 = vadd.f32 %v421, %v509
    %v511 = vpop.f32.mrf.mxu0
    %v512 = vadd.f32 %v423, %v511
    %513 = vmatmul.bf16.gmra.mxu0 %v163
    %v514 = vpop.f32.mrf.mxu0
    %v515 = vadd.f32 %v426, %v514
    %v516 = vpop.f32.mrf.mxu0
    %v517 = vadd.f32 %v428, %v516
    %518 = vmatmul.bf16.gmra.mxu0 %v165
    %v519 = vpop.f32.mrf.mxu0
    %v520 = vadd.f32 %v431, %v519
    %v521 = vpop.f32.mrf.mxu0
    %v522 = vadd.f32 %v433, %v521
    %523 = vmatmul.bf16.gmra.mxu0 %v167
    %v524 = vpop.f32.mrf.mxu0
    %v525 = vadd.f32 %v436, %v524
    %v526 = vpop.f32.mrf.mxu0
    %v527 = vadd.f32 %v438, %v526
    %528 = vmatmul.bf16.gmra.mxu0 %v169
    %v529 = vpop.f32.mrf.mxu0
    %v530 = vadd.f32 %v441, %v529
    %v531 = vpop.f32.mrf.mxu0
    %v532 = vadd.f32 %v443, %v531
    %533 = vmatmul.bf16.gmra.mxu0 %v171
    %v534 = vpop.f32.mrf.mxu0
    %v535 = vadd.f32 %v446, %v534
    %v536 = vpop.f32.mrf.mxu0
    %v537 = vadd.f32 %v448, %v536
    %538 = vmatmul.bf16.gmra.mxu0 %v173
    %v539 = vpop.f32.mrf.mxu0
    %v540 = vadd.f32 %v451, %v539
    %v541 = vpop.f32.mrf.mxu0
    %v542 = vadd.f32 %v453, %v541
    %543 = vmatmul.bf16.gmra.mxu0 %v175
    %v544 = vpop.f32.mrf.mxu0
    %v545 = vadd.f32 %v456, %v544
    %v546 = vpop.f32.mrf.mxu0
    %v547 = vadd.f32 %v458, %v546
    %548 = vmatmul.bf16.gmra.mxu0 %v177
    %v549 = vpop.f32.mrf.mxu0
    %v550 = vadd.f32 %v461, %v549
    %v551 = vpop.f32.mrf.mxu0
    %v552 = vadd.f32 %v463, %v551
    %553 = vdwg.mxu0
    %554 = vmatpush.bf16.msra.mxu0 %v327
    %555 = vmatpush.bf16.msra.mxu0 %v325
    %556 = vmatpush.bf16.msra.mxu0 %v323
    %557 = vmatpush.bf16.msra.mxu0 %v321
    %558 = vmatpush.bf16.msra.mxu0 %v319
    %559 = vmatpush.bf16.msra.mxu0 %v317
    %560 = vmatpush.bf16.msra.mxu0 %v315
    %561 = vmatpush.bf16.msra.mxu0 %v313
    %562 = vmatmul.bf16.gmra.mxu0 %v146
    %v563 = vpop.f32.mrf.mxu0
    %v564 = vadd.f32 %v213, %v563
    %v565 = vpop.f32.mrf.mxu0
    %v566 = vadd.f32 %v213, %v565
    %567 = vmatmul.bf16.gmra.mxu0 %v148
    %v568 = vpop.f32.mrf.mxu0
    %v569 = vadd.f32 %v213, %v568
    %v570 = vpop.f32.mrf.mxu0
    %v571 = vadd.f32 %v213, %v570
    %572 = vmatmul.bf16.gmra.mxu0 %v150
    %v573 = vpop.f32.mrf.mxu0
    %v574 = vadd.f32 %v213, %v573
    %v575 = vpop.f32.mrf.mxu0
    %v576 = vadd.f32 %v213, %v575
    %577 = vmatmul.bf16.gmra.mxu0 %v152
    %v578 = vpop.f32.mrf.mxu0
    %v579 = vadd.f32 %v213, %v578
    %v580 = vpop.f32.mrf.mxu0
    %v581 = vadd.f32 %v213, %v580
    %582 = vmatmul.bf16.gmra.mxu0 %v154
    %v583 = vpop.f32.mrf.mxu0
    %v584 = vadd.f32 %v213, %v583
    %v585 = vpop.f32.mrf.mxu0
    %v586 = vadd.f32 %v213, %v585
    %587 = vmatmul.bf16.gmra.mxu0 %v156
    %v588 = vpop.f32.mrf.mxu0
    %v589 = vadd.f32 %v213, %v588
    %v590 = vpop.f32.mrf.mxu0
    %v591 = vadd.f32 %v213, %v590
    %592 = vmatmul.bf16.gmra.mxu0 %v158
    %v593 = vpop.f32.mrf.mxu0
    %v594 = vadd.f32 %v213, %v593
    %v595 = vpop.f32.mrf.mxu0
    %v596 = vadd.f32 %v213, %v595
    %597 = vmatmul.bf16.gmra.mxu0 %v160
    %v598 = vpop.f32.mrf.mxu0
    %v599 = vadd.f32 %v213, %v598
    %v600 = vpop.f32.mrf.mxu0
    %v601 = vadd.f32 %v213, %v600
    %602 = vmatmul.bf16.gmra.mxu0 %v162
    %v603 = vpop.f32.mrf.mxu0
    %v604 = vadd.f32 %v213, %v603
    %v605 = vpop.f32.mrf.mxu0
    %v606 = vadd.f32 %v213, %v605
    %607 = vmatmul.bf16.gmra.mxu0 %v164
    %v608 = vpop.f32.mrf.mxu0
    %v609 = vadd.f32 %v213, %v608
    %v610 = vpop.f32.mrf.mxu0
    %v611 = vadd.f32 %v213, %v610
    %612 = vmatmul.bf16.gmra.mxu0 %v166
    %v613 = vpop.f32.mrf.mxu0
    %v614 = vadd.f32 %v213, %v613
    %v615 = vpop.f32.mrf.mxu0
    %v616 = vadd.f32 %v213, %v615
    %617 = vmatmul.bf16.gmra.mxu0 %v168
    %v618 = vpop.f32.mrf.mxu0
    %v619 = vadd.f32 %v213, %v618
    %v620 = vpop.f32.mrf.mxu0
    %v621 = vadd.f32 %v213, %v620
    %622 = vmatmul.bf16.gmra.mxu0 %v170
    %v623 = vpop.f32.mrf.mxu0
    %v624 = vadd.f32 %v213, %v623
    %v625 = vpop.f32.mrf.mxu0
    %v626 = vadd.f32 %v213, %v625
    %627 = vmatmul.bf16.gmra.mxu0 %v172
    %v628 = vpop.f32.mrf.mxu0
    %v629 = vadd.f32 %v213, %v628
    %v630 = vpop.f32.mrf.mxu0
    %v631 = vadd.f32 %v213, %v630
    %632 = vmatmul.bf16.gmra.mxu0 %v174
    %v633 = vpop.f32.mrf.mxu0
    %v634 = vadd.f32 %v213, %v633
    %v635 = vpop.f32.mrf.mxu0
    %v636 = vadd.f32 %v213, %v635
    %637 = vmatmul.bf16.gmra.mxu0 %v176
    %v638 = vpop.f32.mrf.mxu0
    %v639 = vadd.f32 %v213, %v638
    %v640 = vpop.f32.mrf.mxu0
    %v641 = vadd.f32 %v213, %v640
    %642 = vdwg.mxu0
    %643 = vmatpush.bf16.msra.mxu0 %v343
    %644 = vmatpush.bf16.msra.mxu0 %v341
    %645 = vmatpush.bf16.msra.mxu0 %v339
    %646 = vmatpush.bf16.msra.mxu0 %v337
    %647 = vmatpush.bf16.msra.mxu0 %v335
    %648 = vmatpush.bf16.msra.mxu0 %v333
    %649 = vmatpush.bf16.msra.mxu0 %v331
    %650 = vmatpush.bf16.msra.mxu0 %v329
    %651 = vmatmul.bf16.gmra.mxu0 %v147
    %v652 = vpop.f32.mrf.mxu0
    %v653 = vadd.f32 %v564, %v652
    %v654 = vpop.f32.mrf.mxu0
    %v655 = vadd.f32 %v566, %v654
    %656 = vmatmul.bf16.gmra.mxu0 %v149
    %v657 = vpop.f32.mrf.mxu0
    %v658 = vadd.f32 %v569, %v657
    %v659 = vpop.f32.mrf.mxu0
    %v660 = vadd.f32 %v571, %v659
    %661 = vmatmul.bf16.gmra.mxu0 %v151
    %v662 = vpop.f32.mrf.mxu0
    %v663 = vadd.f32 %v574, %v662
    %v664 = vpop.f32.mrf.mxu0
    %v665 = vadd.f32 %v576, %v664
    %666 = vmatmul.bf16.gmra.mxu0 %v153
    %v667 = vpop.f32.mrf.mxu0
    %v668 = vadd.f32 %v579, %v667
    %v669 = vpop.f32.mrf.mxu0
    %v670 = vadd.f32 %v581, %v669
    %671 = vmatmul.bf16.gmra.mxu0 %v155
    %v672 = vpop.f32.mrf.mxu0
    %v673 = vadd.f32 %v584, %v672
    %v674 = vpop.f32.mrf.mxu0
    %v675 = vadd.f32 %v586, %v674
    %676 = vmatmul.bf16.gmra.mxu0 %v157
    %v677 = vpop.f32.mrf.mxu0
    %v678 = vadd.f32 %v589, %v677
    %v679 = vpop.f32.mrf.mxu0
    %v680 = vadd.f32 %v591, %v679
    %681 = vmatmul.bf16.gmra.mxu0 %v159
    %v682 = vpop.f32.mrf.mxu0
    %v683 = vadd.f32 %v594, %v682
    %v684 = vpop.f32.mrf.mxu0
    %v685 = vadd.f32 %v596, %v684
    %686 = vmatmul.bf16.gmra.mxu0 %v161
    %v687 = vpop.f32.mrf.mxu0
    %v688 = vadd.f32 %v599, %v687
    %v689 = vpop.f32.mrf.mxu0
    %v690 = vadd.f32 %v601, %v689
    %691 = vmatmul.bf16.gmra.mxu0 %v163
    %v692 = vpop.f32.mrf.mxu0
    %v693 = vadd.f32 %v604, %v692
    %v694 = vpop.f32.mrf.mxu0
    %v695 = vadd.f32 %v606, %v694
    %696 = vmatmul.bf16.gmra.mxu0 %v165
    %v697 = vpop.f32.mrf.mxu0
    %v698 = vadd.f32 %v609, %v697
    %v699 = vpop.f32.mrf.mxu0
    %v700 = vadd.f32 %v611, %v699
    %701 = vmatmul.bf16.gmra.mxu0 %v167
    %v702 = vpop.f32.mrf.mxu0
    %v703 = vadd.f32 %v614, %v702
    %v704 = vpop.f32.mrf.mxu0
    %v705 = vadd.f32 %v616, %v704
    %706 = vmatmul.bf16.gmra.mxu0 %v169
    %v707 = vpop.f32.mrf.mxu0
    %v708 = vadd.f32 %v619, %v707
    %v709 = vpop.f32.mrf.mxu0
    %v710 = vadd.f32 %v621, %v709
    %711 = vmatmul.bf16.gmra.mxu0 %v171
    %v712 = vpop.f32.mrf.mxu0
    %v713 = vadd.f32 %v624, %v712
    %v714 = vpop.f32.mrf.mxu0
    %v715 = vadd.f32 %v626, %v714
    %716 = vmatmul.bf16.gmra.mxu0 %v173
    %v717 = vpop.f32.mrf.mxu0
    %v718 = vadd.f32 %v629, %v717
    %v719 = vpop.f32.mrf.mxu0
    %v720 = vadd.f32 %v631, %v719
    %721 = vmatmul.bf16.gmra.mxu0 %v175
    %v722 = vpop.f32.mrf.mxu0
    %v723 = vadd.f32 %v634, %v722
    %v724 = vpop.f32.mrf.mxu0
    %v725 = vadd.f32 %v636, %v724
    %726 = vmatmul.bf16.gmra.mxu0 %v177
    %v727 = vpop.f32.mrf.mxu0
    %v728 = vadd.f32 %v639, %v727
    %v729 = vpop.f32.mrf.mxu0
    %v730 = vadd.f32 %v641, %v729
    %731 = vdwg.mxu0
    %v732 = vmax.f32 %v475, 0.0
    %v733 = vmax.f32 %v653, 0.0
    %v734 = vmax.f32 %v477, 0.0
    %v735 = vmax.f32 %v655, 0.0
    %v736 = vmax.f32 %v480, 0.0
    %v737 = vmax.f32 %v658, 0.0
    %v738 = vmax.f32 %v482, 0.0
    %v739 = vmax.f32 %v660, 0.0
    %v740 = vmax.f32 %v485, 0.0
    %v741 = vmax.f32 %v663, 0.0
    %v742 = vmax.f32 %v487, 0.0
    %v743 = vmax.f32 %v665, 0.0
    %v744 = vmax.f32 %v490, 0.0
    %v745 = vmax.f32 %v668, 0.0
    %v746 = vmax.f32 %v492, 0.0
    %v747 = vmax.f32 %v670, 0.0
    %v748 = vmax.f32 %v495, 0.0
    %v749 = vmax.f32 %v673, 0.0
    %v750 = vmax.f32 %v497, 0.0
    %v751 = vmax.f32 %v675, 0.0
    %v752 = vmax.f32 %v500, 0.0
    %v753 = vmax.f32 %v678, 0.0
    %v754 = vmax.f32 %v502, 0.0
    %v755 = vmax.f32 %v680, 0.0
    %v756 = vmax.f32 %v505, 0.0
    %v757 = vmax.f32 %v683, 0.0
    %v758 = vmax.f32 %v507, 0.0
    %v759 = vmax.f32 %v685, 0.0
    %v760 = vmax.f32 %v510, 0.0
    %v761 = vmax.f32 %v688, 0.0
    %v762 = vmax.f32 %v512, 0.0
    %v763 = vmax.f32 %v690, 0.0
    %v764 = vmax.f32 %v515, 0.0
    %v765 = vmax.f32 %v693, 0.0
    %v766 = vmax.f32 %v517, 0.0
    %v767 = vmax.f32 %v695, 0.0
    %v768 = vmax.f32 %v520, 0.0
    %v769 = vmax.f32 %v698, 0.0
    %v770 = vmax.f32 %v522, 0.0
    %v771 = vmax.f32 %v700, 0.0
    %v772 = vmax.f32 %v525, 0.0
    %v773 = vmax.f32 %v703, 0.0
    %v774 = vmax.f32 %v527, 0.0
    %v775 = vmax.f32 %v705, 0.0
    %v776 = vmax.f32 %v530, 0.0
    %v777 = vmax.f32 %v708, 0.0
    %v778 = vmax.f32 %v532, 0.0
    %v779 = vmax.f32 %v710, 0.0
    %v780 = vmax.f32 %v535, 0.0
    %v781 = vmax.f32 %v713, 0.0
    %v782 = vmax.f32 %v537, 0.0
    %v783 = vmax.f32 %v715, 0.0
    %v784 = vmax.f32 %v540, 0.0
    %v785 = vmax.f32 %v718, 0.0
    %v786 = vmax.f32 %v542, 0.0
    %v787 = vmax.f32 %v720, 0.0
    %v788 = vmax.f32 %v545, 0.0
    %v789 = vmax.f32 %v723, 0.0
    %v790 = vmax.f32 %v547, 0.0
    %v791 = vmax.f32 %v725, 0.0
    %v792 = vmax.f32 %v550, 0.0
    %v793 = vmax.f32 %v728, 0.0
    %v794 = vmax.f32 %v552, 0.0
    %v795 = vmax.f32 %v730, 0.0
    %v796 = vpack.c.bf16 %v734, %v732
    %v797 = vpack.c.bf16 %v735, %v733
    %v798 = vpack.c.bf16 %v738, %v736
    %v799 = vpack.c.bf16 %v739, %v737
    %v800 = vpack.c.bf16 %v742, %v740
    %v801 = vpack.c.bf16 %v743, %v741
    %v802 = vpack.c.bf16 %v746, %v744
    %v803 = vpack.c.bf16 %v747, %v745
    %v804 = vpack.c.bf16 %v750, %v748
    %v805 = vpack.c.bf16 %v751, %v749
    %v806 = vpack.c.bf16 %v754, %v752
    %v807 = vpack.c.bf16 %v755, %v753
    %v808 = vpack.c.bf16 %v758, %v756
    %v809 = vpack.c.bf16 %v759, %v757
    %v810 = vpack.c.bf16 %v762, %v760
    %v811 = vpack.c.bf16 %v763, %v761
    %v812 = vpack.c.bf16 %v766, %v764
    %v813 = vpack.c.bf16 %v767, %v765
    %v814 = vpack.c.bf16 %v770, %v768
    %v815 = vpack.c.bf16 %v771, %v769
    %v816 = vpack.c.bf16 %v774, %v772
    %v817 = vpack.c.bf16 %v775, %v773
    %v818 = vpack.c.bf16 %v778, %v776
    %v819 = vpack.c.bf16 %v779, %v777
    %v820 = vpack.c.bf16 %v782, %v780
    %v821 = vpack.c.bf16 %v783, %v781
    %v822 = vpack.c.bf16 %v786, %v784
    %v823 = vpack.c.bf16 %v787, %v785
    %v824 = vpack.c.bf16 %v790, %v788
    %v825 = vpack.c.bf16 %v791, %v789
    %v826 = vpack.c.bf16 %v794, %v792
    %v827 = vpack.c.bf16 %v795, %v793
    %v828 = vld [vmem:[#allocation8] sm:$0xff]
    %v829 = vld [vmem:[#allocation8 + $0x8] sm:$0xff]
    %v830 = vld [vmem:[#allocation8 + $0x10] sm:$0xff]
    %v831 = vld [vmem:[#allocation8 + $0x18] sm:$0xff]
    %v832 = vld [vmem:[#allocation8 + $0x20] sm:$0xff]
    %v833 = vld [vmem:[#allocation8 + $0x28] sm:$0xff]
    %v834 = vld [vmem:[#allocation8 + $0x30] sm:$0xff]
    %v835 = vld [vmem:[#allocation8 + $0x38] sm:$0xff]
    %v836 = vld [vmem:[#allocation8 + $0x40] sm:$0xff]
    %v837 = vld [vmem:[#allocation8 + $0x48] sm:$0xff]
    %v838 = vld [vmem:[#allocation8 + $0x50] sm:$0xff]
    %v839 = vld [vmem:[#allocation8 + $0x58] sm:$0xff]
    %v840 = vld [vmem:[#allocation8 + $0x60] sm:$0xff]
    %v841 = vld [vmem:[#allocation8 + $0x68] sm:$0xff]
    %v842 = vld [vmem:[#allocation8 + $0x70] sm:$0xff]
    %v843 = vld [vmem:[#allocation8 + $0x78] sm:$0xff]
    %v844 = vld [vmem:[#allocation8 + $0x80] sm:$0xff]
    %v845 = vld [vmem:[#allocation8 + $0x88] sm:$0xff]
    %v846 = vld [vmem:[#allocation8 + $0x90] sm:$0xff]
    %v847 = vld [vmem:[#allocation8 + $0x98] sm:$0xff]
    %v848 = vld [vmem:[#allocation8 + $0xa0] sm:$0xff]
    %v849 = vld [vmem:[#allocation8 + $0xa8] sm:$0xff]
    %v850 = vld [vmem:[#allocation8 + $0xb0] sm:$0xff]
    %v851 = vld [vmem:[#allocation8 + $0xb8] sm:$0xff]
    %v852 = vld [vmem:[#allocation8 + $0xc0] sm:$0xff]
    %v853 = vld [vmem:[#allocation8 + $0xc8] sm:$0xff]
    %v854 = vld [vmem:[#allocation8 + $0xd0] sm:$0xff]
    %v855 = vld [vmem:[#allocation8 + $0xd8] sm:$0xff]
    %v856 = vld [vmem:[#allocation8 + $0xe0] sm:$0xff]
    %v857 = vld [vmem:[#allocation8 + $0xe8] sm:$0xff]
    %v858 = vld [vmem:[#allocation8 + $0xf0] sm:$0xff]
    %v859 = vld [vmem:[#allocation8 + $0xf8] sm:$0xff]
    %v860 = vld [vmem:[%s4] sm:$0x3]
    %v862 = vperm.slane %v860, 0
    %v863 = vperm.slane %v860, 1
    %v898 = vunpack.c.l.b16 %v828
    %v899 = vunpack.c.h.b16 %v828
    %v900 = vunpack.c.l.b16 %v829
    %v901 = vunpack.c.h.b16 %v829
    %v902 = vunpack.c.l.b16 %v830
    %v903 = vunpack.c.h.b16 %v830
    %v904 = vunpack.c.l.b16 %v831
    %v905 = vunpack.c.h.b16 %v831
    %v906 = vunpack.c.l.b16 %v832
    %v907 = vunpack.c.h.b16 %v832
    %v908 = vunpack.c.l.b16 %v833
    %v909 = vunpack.c.h.b16 %v833
    %v910 = vunpack.c.l.b16 %v834
    %v911 = vunpack.c.h.b16 %v834
    %v912 = vunpack.c.l.b16 %v835
    %v913 = vunpack.c.h.b16 %v835
    %v914 = vunpack.c.l.b16 %v836
    %v915 = vunpack.c.h.b16 %v836
    %v916 = vunpack.c.l.b16 %v837
    %v917 = vunpack.c.h.b16 %v837
    %v918 = vunpack.c.l.b16 %v838
    %v919 = vunpack.c.h.b16 %v838
    %v920 = vunpack.c.l.b16 %v839
    %v921 = vunpack.c.h.b16 %v839
    %v922 = vunpack.c.l.b16 %v840
    %v923 = vunpack.c.h.b16 %v840
    %v924 = vunpack.c.l.b16 %v841
    %v925 = vunpack.c.h.b16 %v841
    %v926 = vunpack.c.l.b16 %v842
    %v927 = vunpack.c.h.b16 %v842
    %v928 = vunpack.c.l.b16 %v843
    %v929 = vunpack.c.h.b16 %v843
    %v930 = vunpack.c.l.b16 %v844
    %v931 = vunpack.c.h.b16 %v844
    %v932 = vunpack.c.l.b16 %v845
    %v933 = vunpack.c.h.b16 %v845
    %v934 = vunpack.c.l.b16 %v846
    %v935 = vunpack.c.h.b16 %v846
    %v936 = vunpack.c.l.b16 %v847
    %v937 = vunpack.c.h.b16 %v847
    %v938 = vunpack.c.l.b16 %v848
    %v939 = vunpack.c.h.b16 %v848
    %v940 = vunpack.c.l.b16 %v849
    %v941 = vunpack.c.h.b16 %v849
    %v942 = vunpack.c.l.b16 %v850
    %v943 = vunpack.c.h.b16 %v850
    %v944 = vunpack.c.l.b16 %v851
    %v945 = vunpack.c.h.b16 %v851
    %v946 = vunpack.c.l.b16 %v852
    %v947 = vunpack.c.h.b16 %v852
    %v948 = vunpack.c.l.b16 %v853
    %v949 = vunpack.c.h.b16 %v853
    %v950 = vunpack.c.l.b16 %v854
    %v951 = vunpack.c.h.b16 %v854
    %v952 = vunpack.c.l.b16 %v855
    %v953 = vunpack.c.h.b16 %v855
    %v954 = vunpack.c.l.b16 %v856
    %v955 = vunpack.c.h.b16 %v856
    %v956 = vunpack.c.l.b16 %v857
    %v957 = vunpack.c.h.b16 %v857
    %v958 = vunpack.c.l.b16 %v858
    %v959 = vunpack.c.h.b16 %v858
    %v960 = vunpack.c.l.b16 %v859
    %v961 = vunpack.c.h.b16 %v859
    %v962 = vpack.c.b16 %v900, %v898
    %v963 = vpack.c.b16 %v901, %v899
    %v964 = vpack.c.b16 %v904, %v902
    %v965 = vpack.c.b16 %v905, %v903
    %v966 = vpack.c.b16 %v908, %v906
    %v967 = vpack.c.b16 %v909, %v907
    %v968 = vpack.c.b16 %v912, %v910
    %v969 = vpack.c.b16 %v913, %v911
    %v970 = vpack.c.b16 %v916, %v914
    %v971 = vpack.c.b16 %v917, %v915
    %v972 = vpack.c.b16 %v920, %v918
    %v973 = vpack.c.b16 %v921, %v919
    %v974 = vpack.c.b16 %v924, %v922
    %v975 = vpack.c.b16 %v925, %v923
    %v976 = vpack.c.b16 %v928, %v926
    %v977 = vpack.c.b16 %v929, %v927
    %v978 = vpack.c.b16 %v932, %v930
    %v979 = vpack.c.b16 %v933, %v931
    %v980 = vpack.c.b16 %v936, %v934
    %v981 = vpack.c.b16 %v937, %v935
    %v982 = vpack.c.b16 %v940, %v938
    %v983 = vpack.c.b16 %v941, %v939
    %v984 = vpack.c.b16 %v944, %v942
    %v985 = vpack.c.b16 %v945, %v943
    %v986 = vpack.c.b16 %v948, %v946
    %v987 = vpack.c.b16 %v949, %v947
    %v988 = vpack.c.b16 %v952, %v950
    %v989 = vpack.c.b16 %v953, %v951
    %v990 = vpack.c.b16 %v956, %v954
    %v991 = vpack.c.b16 %v957, %v955
    %v992 = vpack.c.b16 %v960, %v958
    %v993 = vpack.c.b16 %v961, %v959
    %1026 = vmatpush.bf16.msra.mxu0 %v976
    %1027 = vmatpush.bf16.msra.mxu0 %v974
    %1028 = vmatpush.bf16.msra.mxu0 %v972
    %1029 = vmatpush.bf16.msra.mxu0 %v970
    %1030 = vmatpush.bf16.msra.mxu0 %v968
    %1031 = vmatpush.bf16.msra.mxu0 %v966
    %1032 = vmatpush.bf16.msra.mxu0 %v964
    %1033 = vmatpush.bf16.msra.mxu0 %v962
    %1034 = vmatmul.bf16.gmra.mxu0 %v796
    %v1035 = vpop.f32.mrf.mxu0
    %v1036 = vadd.f32 %v862, %v1035
    %v1037 = vpop.f32.mrf.mxu0
    %v1038 = vadd.f32 %v862, %v1037
    %1039 = vmatmul.bf16.gmra.mxu0 %v798
    %v1040 = vpop.f32.mrf.mxu0
    %v1041 = vadd.f32 %v862, %v1040
    %v1042 = vpop.f32.mrf.mxu0
    %v1043 = vadd.f32 %v862, %v1042
    %1044 = vmatmul.bf16.gmra.mxu0 %v800
    %v1045 = vpop.f32.mrf.mxu0
    %v1046 = vadd.f32 %v862, %v1045
    %v1047 = vpop.f32.mrf.mxu0
    %v1048 = vadd.f32 %v862, %v1047
    %1049 = vmatmul.bf16.gmra.mxu0 %v802
    %v1050 = vpop.f32.mrf.mxu0
    %v1051 = vadd.f32 %v862, %v1050
    %v1052 = vpop.f32.mrf.mxu0
    %v1053 = vadd.f32 %v862, %v1052
    %1054 = vmatmul.bf16.gmra.mxu0 %v804
    %v1055 = vpop.f32.mrf.mxu0
    %v1056 = vadd.f32 %v862, %v1055
    %v1057 = vpop.f32.mrf.mxu0
    %v1058 = vadd.f32 %v862, %v1057
    %1059 = vmatmul.bf16.gmra.mxu0 %v806
    %v1060 = vpop.f32.mrf.mxu0
    %v1061 = vadd.f32 %v862, %v1060
    %v1062 = vpop.f32.mrf.mxu0
    %v1063 = vadd.f32 %v862, %v1062
    %1064 = vmatmul.bf16.gmra.mxu0 %v808
    %v1065 = vpop.f32.mrf.mxu0
    %v1066 = vadd.f32 %v862, %v1065
    %v1067 = vpop.f32.mrf.mxu0
    %v1068 = vadd.f32 %v862, %v1067
    %1069 = vmatmul.bf16.gmra.mxu0 %v810
    %v1070 = vpop.f32.mrf.mxu0
    %v1071 = vadd.f32 %v862, %v1070
    %v1072 = vpop.f32.mrf.mxu0
    %v1073 = vadd.f32 %v862, %v1072
    %1074 = vmatmul.bf16.gmra.mxu0 %v812
    %v1075 = vpop.f32.mrf.mxu0
    %v1076 = vadd.f32 %v862, %v1075
    %v1077 = vpop.f32.mrf.mxu0
    %v1078 = vadd.f32 %v862, %v1077
    %1079 = vmatmul.bf16.gmra.mxu0 %v814
    %v1080 = vpop.f32.mrf.mxu0
    %v1081 = vadd.f32 %v862, %v1080
    %v1082 = vpop.f32.mrf.mxu0
    %v1083 = vadd.f32 %v862, %v1082
    %1084 = vmatmul.bf16.gmra.mxu0 %v816
    %v1085 = vpop.f32.mrf.mxu0
    %v1086 = vadd.f32 %v862, %v1085
    %v1087 = vpop.f32.mrf.mxu0
    %v1088 = vadd.f32 %v862, %v1087
    %1089 = vmatmul.bf16.gmra.mxu0 %v818
    %v1090 = vpop.f32.mrf.mxu0
    %v1091 = vadd.f32 %v862, %v1090
    %v1092 = vpop.f32.mrf.mxu0
    %v1093 = vadd.f32 %v862, %v1092
    %1094 = vmatmul.bf16.gmra.mxu0 %v820
    %v1095 = vpop.f32.mrf.mxu0
    %v1096 = vadd.f32 %v862, %v1095
    %v1097 = vpop.f32.mrf.mxu0
    %v1098 = vadd.f32 %v862, %v1097
    %1099 = vmatmul.bf16.gmra.mxu0 %v822
    %v1100 = vpop.f32.mrf.mxu0
    %v1101 = vadd.f32 %v862, %v1100
    %v1102 = vpop.f32.mrf.mxu0
    %v1103 = vadd.f32 %v862, %v1102
    %1104 = vmatmul.bf16.gmra.mxu0 %v824
    %v1105 = vpop.f32.mrf.mxu0
    %v1106 = vadd.f32 %v862, %v1105
    %v1107 = vpop.f32.mrf.mxu0
    %v1108 = vadd.f32 %v862, %v1107
    %1109 = vmatmul.bf16.gmra.mxu0 %v826
    %v1110 = vpop.f32.mrf.mxu0
    %v1111 = vadd.f32 %v862, %v1110
    %v1112 = vpop.f32.mrf.mxu0
    %v1113 = vadd.f32 %v862, %v1112
    %1114 = vdwg.mxu0
    %1115 = vmatpush.bf16.msra.mxu0 %v992
    %1116 = vmatpush.bf16.msra.mxu0 %v990
    %1117 = vmatpush.bf16.msra.mxu0 %v988
    %1118 = vmatpush.bf16.msra.mxu0 %v986
    %1119 = vmatpush.bf16.msra.mxu0 %v984
    %1120 = vmatpush.bf16.msra.mxu0 %v982
    %1121 = vmatpush.bf16.msra.mxu0 %v980
    %1122 = vmatpush.bf16.msra.mxu0 %v978
    %1123 = vmatmul.bf16.gmra.mxu0 %v797
    %v1124 = vpop.f32.mrf.mxu0
    %v1125 = vadd.f32 %v1036, %v1124
    %v1126 = vpop.f32.mrf.mxu0
    %v1127 = vadd.f32 %v1038, %v1126
    %1128 = vmatmul.bf16.gmra.mxu0 %v799
    %v1129 = vpop.f32.mrf.mxu0
    %v1130 = vadd.f32 %v1041, %v1129
    %v1131 = vpop.f32.mrf.mxu0
    %v1132 = vadd.f32 %v1043, %v1131
    %1133 = vmatmul.bf16.gmra.mxu0 %v801
    %v1134 = vpop.f32.mrf.mxu0
    %v1135 = vadd.f32 %v1046, %v1134
    %v1136 = vpop.f32.mrf.mxu0
    %v1137 = vadd.f32 %v1048, %v1136
    %1138 = vmatmul.bf16.gmra.mxu0 %v803
    %v1139 = vpop.f32.mrf.mxu0
    %v1140 = vadd.f32 %v1051, %v1139
    %v1141 = vpop.f32.mrf.mxu0
    %v1142 = vadd.f32 %v1053, %v1141
    %1143 = vmatmul.bf16.gmra.mxu0 %v805
    %v1144 = vpop.f32.mrf.mxu0
    %v1145 = vadd.f32 %v1056, %v1144
    %v1146 = vpop.f32.mrf.mxu0
    %v1147 = vadd.f32 %v1058, %v1146
    %1148 = vmatmul.bf16.gmra.mxu0 %v807
    %v1149 = vpop.f32.mrf.mxu0
    %v1150 = vadd.f32 %v1061, %v1149
    %v1151 = vpop.f32.mrf.mxu0
    %v1152 = vadd.f32 %v1063, %v1151
    %1153 = vmatmul.bf16.gmra.mxu0 %v809
    %v1154 = vpop.f32.mrf.mxu0
    %v1155 = vadd.f32 %v1066, %v1154
    %v1156 = vpop.f32.mrf.mxu0
    %v1157 = vadd.f32 %v1068, %v1156
    %1158 = vmatmul.bf16.gmra.mxu0 %v811
    %v1159 = vpop.f32.mrf.mxu0
    %v1160 = vadd.f32 %v1071, %v1159
    %v1161 = vpop.f32.mrf.mxu0
    %v1162 = vadd.f32 %v1073, %v1161
    %1163 = vmatmul.bf16.gmra.mxu0 %v813
    %v1164 = vpop.f32.mrf.mxu0
    %v1165 = vadd.f32 %v1076, %v1164
    %v1166 = vpop.f32.mrf.mxu0
    %v1167 = vadd.f32 %v1078, %v1166
    %1168 = vmatmul.bf16.gmra.mxu0 %v815
    %v1169 = vpop.f32.mrf.mxu0
    %v1170 = vadd.f32 %v1081, %v1169
    %v1171 = vpop.f32.mrf.mxu0
    %v1172 = vadd.f32 %v1083, %v1171
    %1173 = vmatmul.bf16.gmra.mxu0 %v817
    %v1174 = vpop.f32.mrf.mxu0
    %v1175 = vadd.f32 %v1086, %v1174
    %v1176 = vpop.f32.mrf.mxu0
    %v1177 = vadd.f32 %v1088, %v1176
    %1178 = vmatmul.bf16.gmra.mxu0 %v819
    %v1179 = vpop.f32.mrf.mxu0
    %v1180 = vadd.f32 %v1091, %v1179
    %v1181 = vpop.f32.mrf.mxu0
    %v1182 = vadd.f32 %v1093, %v1181
    %1183 = vmatmul.bf16.gmra.mxu0 %v821
    %v1184 = vpop.f32.mrf.mxu0
    %v1185 = vadd.f32 %v1096, %v1184
    %v1186 = vpop.f32.mrf.mxu0
    %v1187 = vadd.f32 %v1098, %v1186
    %1188 = vmatmul.bf16.gmra.mxu0 %v823
    %v1189 = vpop.f32.mrf.mxu0
    %v1190 = vadd.f32 %v1101, %v1189
    %v1191 = vpop.f32.mrf.mxu0
    %v1192 = vadd.f32 %v1103, %v1191
    %1193 = vmatmul.bf16.gmra.mxu0 %v825
    %v1194 = vpop.f32.mrf.mxu0
    %v1195 = vadd.f32 %v1106, %v1194
    %v1196 = vpop.f32.mrf.mxu0
    %v1197 = vadd.f32 %v1108, %v1196
    %1198 = vmatmul.bf16.gmra.mxu0 %v827
    %v1199 = vpop.f32.mrf.mxu0
    %v1200 = vadd.f32 %v1111, %v1199
    %v1201 = vpop.f32.mrf.mxu0
    %v1202 = vadd.f32 %v1113, %v1201
    %1203 = vdwg.mxu0
    %1204 = vmatpush.bf16.msra.mxu0 %v977
    %1205 = vmatpush.bf16.msra.mxu0 %v975
    %1206 = vmatpush.bf16.msra.mxu0 %v973
    %1207 = vmatpush.bf16.msra.mxu0 %v971
    %1208 = vmatpush.bf16.msra.mxu0 %v969
    %1209 = vmatpush.bf16.msra.mxu0 %v967
    %1210 = vmatpush.bf16.msra.mxu0 %v965
    %1211 = vmatpush.bf16.msra.mxu0 %v963
    %1212 = vmatmul.bf16.gmra.mxu0 %v796
    %v1213 = vpop.f32.mrf.mxu0
    %v1214 = vadd.f32 %v863, %v1213
    %v1215 = vpop.f32.mrf.mxu0
    %v1216 = vadd.f32 %v863, %v1215
    %1217 = vmatmul.bf16.gmra.mxu0 %v798
    %v1218 = vpop.f32.mrf.mxu0
    %v1219 = vadd.f32 %v863, %v1218
    %v1220 = vpop.f32.mrf.mxu0
    %v1221 = vadd.f32 %v863, %v1220
    %1222 = vmatmul.bf16.gmra.mxu0 %v800
    %v1223 = vpop.f32.mrf.mxu0
    %v1224 = vadd.f32 %v863, %v1223
    %v1225 = vpop.f32.mrf.mxu0
    %v1226 = vadd.f32 %v863, %v1225
    %1227 = vmatmul.bf16.gmra.mxu0 %v802
    %v1228 = vpop.f32.mrf.mxu0
    %v1229 = vadd.f32 %v863, %v1228
    %v1230 = vpop.f32.mrf.mxu0
    %v1231 = vadd.f32 %v863, %v1230
    %1232 = vmatmul.bf16.gmra.mxu0 %v804
    %v1233 = vpop.f32.mrf.mxu0
    %v1234 = vadd.f32 %v863, %v1233
    %v1235 = vpop.f32.mrf.mxu0
    %v1236 = vadd.f32 %v863, %v1235
    %1237 = vmatmul.bf16.gmra.mxu0 %v806
    %v1238 = vpop.f32.mrf.mxu0
    %v1239 = vadd.f32 %v863, %v1238
    %v1240 = vpop.f32.mrf.mxu0
    %v1241 = vadd.f32 %v863, %v1240
    %1242 = vmatmul.bf16.gmra.mxu0 %v808
    %v1243 = vpop.f32.mrf.mxu0
    %v1244 = vadd.f32 %v863, %v1243
    %v1245 = vpop.f32.mrf.mxu0
    %v1246 = vadd.f32 %v863, %v1245
    %1247 = vmatmul.bf16.gmra.mxu0 %v810
    %v1248 = vpop.f32.mrf.mxu0
    %v1249 = vadd.f32 %v863, %v1248
    %v1250 = vpop.f32.mrf.mxu0
    %v1251 = vadd.f32 %v863, %v1250
    %1252 = vmatmul.bf16.gmra.mxu0 %v812
    %v1253 = vpop.f32.mrf.mxu0
    %v1254 = vadd.f32 %v863, %v1253
    %v1255 = vpop.f32.mrf.mxu0
    %v1256 = vadd.f32 %v863, %v1255
    %1257 = vmatmul.bf16.gmra.mxu0 %v814
    %v1258 = vpop.f32.mrf.mxu0
    %v1259 = vadd.f32 %v863, %v1258
    %v1260 = vpop.f32.mrf.mxu0
    %v1261 = vadd.f32 %v863, %v1260
    %1262 = vmatmul.bf16.gmra.mxu0 %v816
    %v1263 = vpop.f32.mrf.mxu0
    %v1264 = vadd.f32 %v863, %v1263
    %v1265 = vpop.f32.mrf.mxu0
    %v1266 = vadd.f32 %v863, %v1265
    %1267 = vmatmul.bf16.gmra.mxu0 %v818
    %v1268 = vpop.f32.mrf.mxu0
    %v1269 = vadd.f32 %v863, %v1268
    %v1270 = vpop.f32.mrf.mxu0
    %v1271 = vadd.f32 %v863, %v1270
    %1272 = vmatmul.bf16.gmra.mxu0 %v820
    %v1273 = vpop.f32.mrf.mxu0
    %v1274 = vadd.f32 %v863, %v1273
    %v1275 = vpop.f32.mrf.mxu0
    %v1276 = vadd.f32 %v863, %v1275
    %1277 = vmatmul.bf16.gmra.mxu0 %v822
    %v1278 = vpop.f32.mrf.mxu0
    %v1279 = vadd.f32 %v863, %v1278
    %v1280 = vpop.f32.mrf.mxu0
    %v1281 = vadd.f32 %v863, %v1280
    %1282 = vmatmul.bf16.gmra.mxu0 %v824
    %v1283 = vpop.f32.mrf.mxu0
    %v1284 = vadd.f32 %v863, %v1283
    %v1285 = vpop.f32.mrf.mxu0
    %v1286 = vadd.f32 %v863, %v1285
    %1287 = vmatmul.bf16.gmra.mxu0 %v826
    %v1288 = vpop.f32.mrf.mxu0
    %v1289 = vadd.f32 %v863, %v1288
    %v1290 = vpop.f32.mrf.mxu0
    %v1291 = vadd.f32 %v863, %v1290
    %1292 = vdwg.mxu0
    %1293 = vmatpush.bf16.msra.mxu0 %v993
    %1294 = vmatpush.bf16.msra.mxu0 %v991
    %1295 = vmatpush.bf16.msra.mxu0 %v989
    %1296 = vmatpush.bf16.msra.mxu0 %v987
    %1297 = vmatpush.bf16.msra.mxu0 %v985
    %1298 = vmatpush.bf16.msra.mxu0 %v983
    %1299 = vmatpush.bf16.msra.mxu0 %v981
    %1300 = vmatpush.bf16.msra.mxu0 %v979
    %1301 = vmatmul.bf16.gmra.mxu0 %v797
    %v1302 = vpop.f32.mrf.mxu0
    %v1303 = vadd.f32 %v1214, %v1302
    %v1304 = vpop.f32.mrf.mxu0
    %v1305 = vadd.f32 %v1216, %v1304
    %1306 = vmatmul.bf16.gmra.mxu0 %v799
    %v1307 = vpop.f32.mrf.mxu0
    %v1308 = vadd.f32 %v1219, %v1307
    %v1309 = vpop.f32.mrf.mxu0
    %v1310 = vadd.f32 %v1221, %v1309
    %1311 = vmatmul.bf16.gmra.mxu0 %v801
    %v1312 = vpop.f32.mrf.mxu0
    %v1313 = vadd.f32 %v1224, %v1312
    %v1314 = vpop.f32.mrf.mxu0
    %v1315 = vadd.f32 %v1226, %v1314
    %1316 = vmatmul.bf16.gmra.mxu0 %v803
    %v1317 = vpop.f32.mrf.mxu0
    %v1318 = vadd.f32 %v1229, %v1317
    %v1319 = vpop.f32.mrf.mxu0
    %v1320 = vadd.f32 %v1231, %v1319
    %1321 = vmatmul.bf16.gmra.mxu0 %v805
    %v1322 = vpop.f32.mrf.mxu0
    %v1323 = vadd.f32 %v1234, %v1322
    %v1324 = vpop.f32.mrf.mxu0
    %v1325 = vadd.f32 %v1236, %v1324
    %1326 = vmatmul.bf16.gmra.mxu0 %v807
    %v1327 = vpop.f32.mrf.mxu0
    %v1328 = vadd.f32 %v1239, %v1327
    %v1329 = vpop.f32.mrf.mxu0
    %v1330 = vadd.f32 %v1241, %v1329
    %1331 = vmatmul.bf16.gmra.mxu0 %v809
    %v1332 = vpop.f32.mrf.mxu0
    %v1333 = vadd.f32 %v1244, %v1332
    %v1334 = vpop.f32.mrf.mxu0
    %v1335 = vadd.f32 %v1246, %v1334
    %1336 = vmatmul.bf16.gmra.mxu0 %v811
    %v1337 = vpop.f32.mrf.mxu0
    %v1338 = vadd.f32 %v1249, %v1337
    %v1339 = vpop.f32.mrf.mxu0
    %v1340 = vadd.f32 %v1251, %v1339
    %1341 = vmatmul.bf16.gmra.mxu0 %v813
    %v1342 = vpop.f32.mrf.mxu0
    %v1343 = vadd.f32 %v1254, %v1342
    %v1344 = vpop.f32.mrf.mxu0
    %v1345 = vadd.f32 %v1256, %v1344
    %1346 = vmatmul.bf16.gmra.mxu0 %v815
    %v1347 = vpop.f32.mrf.mxu0
    %v1348 = vadd.f32 %v1259, %v1347
    %v1349 = vpop.f32.mrf.mxu0
    %v1350 = vadd.f32 %v1261, %v1349
    %1351 = vmatmul.bf16.gmra.mxu0 %v817
    %v1352 = vpop.f32.mrf.mxu0
    %v1353 = vadd.f32 %v1264, %v1352
    %v1354 = vpop.f32.mrf.mxu0
    %v1355 = vadd.f32 %v1266, %v1354
    %1356 = vmatmul.bf16.gmra.mxu0 %v819
    %v1357 = vpop.f32.mrf.mxu0
    %v1358 = vadd.f32 %v1269, %v1357
    %v1359 = vpop.f32.mrf.mxu0
    %v1360 = vadd.f32 %v1271, %v1359
    %1361 = vmatmul.bf16.gmra.mxu0 %v821
    %v1362 = vpop.f32.mrf.mxu0
    %v1363 = vadd.f32 %v1274, %v1362
    %v1364 = vpop.f32.mrf.mxu0
    %v1365 = vadd.f32 %v1276, %v1364
    %1366 = vmatmul.bf16.gmra.mxu0 %v823
    %v1367 = vpop.f32.mrf.mxu0
    %v1368 = vadd.f32 %v1279, %v1367
    %v1369 = vpop.f32.mrf.mxu0
    %v1370 = vadd.f32 %v1281, %v1369
    %1371 = vmatmul.bf16.gmra.mxu0 %v825
    %v1372 = vpop.f32.mrf.mxu0
    %v1373 = vadd.f32 %v1284, %v1372
    %v1374 = vpop.f32.mrf.mxu0
    %v1375 = vadd.f32 %v1286, %v1374
    %1376 = vmatmul.bf16.gmra.mxu0 %v827
    %v1377 = vpop.f32.mrf.mxu0
    %v1378 = vadd.f32 %v1289, %v1377
    %v1379 = vpop.f32.mrf.mxu0
    %v1380 = vadd.f32 %v1291, %v1379
    %1381 = vdwg.mxu0
    %v1382 = vpack.c.bf16 %v1303, %v1125
    %v1383 = vpack.c.bf16 %v1305, %v1127
    %v1384 = vpack.c.bf16 %v1308, %v1130
    %v1385 = vpack.c.bf16 %v1310, %v1132
    %v1386 = vpack.c.bf16 %v1313, %v1135
    %v1387 = vpack.c.bf16 %v1315, %v1137
    %v1388 = vpack.c.bf16 %v1318, %v1140
    %v1389 = vpack.c.bf16 %v1320, %v1142
    %v1390 = vpack.c.bf16 %v1323, %v1145
    %v1391 = vpack.c.bf16 %v1325, %v1147
    %v1392 = vpack.c.bf16 %v1328, %v1150
    %v1393 = vpack.c.bf16 %v1330, %v1152
    %v1394 = vpack.c.bf16 %v1333, %v1155
    %v1395 = vpack.c.bf16 %v1335, %v1157
    %v1396 = vpack.c.bf16 %v1338, %v1160
    %v1397 = vpack.c.bf16 %v1340, %v1162
    %v1398 = vpack.c.bf16 %v1343, %v1165
    %v1399 = vpack.c.bf16 %v1345, %v1167
    %v1400 = vpack.c.bf16 %v1348, %v1170
    %v1401 = vpack.c.bf16 %v1350, %v1172
    %v1402 = vpack.c.bf16 %v1353, %v1175
    %v1403 = vpack.c.bf16 %v1355, %v1177
    %v1404 = vpack.c.bf16 %v1358, %v1180
    %v1405 = vpack.c.bf16 %v1360, %v1182
    %v1406 = vpack.c.bf16 %v1363, %v1185
    %v1407 = vpack.c.bf16 %v1365, %v1187
    %v1408 = vpack.c.bf16 %v1368, %v1190
    %v1409 = vpack.c.bf16 %v1370, %v1192
    %v1410 = vpack.c.bf16 %v1373, %v1195
    %v1411 = vpack.c.bf16 %v1375, %v1197
    %v1412 = vpack.c.bf16 %v1378, %v1200
    %v1413 = vpack.c.bf16 %v1380, %v1202
    %1414 = vst [vmem:[#allocation10] sm:$0xff] %v1382
    %1415 = vst [vmem:[#allocation10 + $0x8] sm:$0xff] %v1383
    %1416 = vst [vmem:[#allocation10 + $0x10] sm:$0xff] %v1384
    %1417 = vst [vmem:[#allocation10 + $0x18] sm:$0xff] %v1385
    %1418 = vst [vmem:[#allocation10 + $0x20] sm:$0xff] %v1386
    %1419 = vst [vmem:[#allocation10 + $0x28] sm:$0xff] %v1387
    %1420 = vst [vmem:[#allocation10 + $0x30] sm:$0xff] %v1388
    %1421 = vst [vmem:[#allocation10 + $0x38] sm:$0xff] %v1389
    %1422 = vst [vmem:[#allocation10 + $0x40] sm:$0xff] %v1390
    %1423 = vst [vmem:[#allocation10 + $0x48] sm:$0xff] %v1391
    %1424 = vst [vmem:[#allocation10 + $0x50] sm:$0xff] %v1392
    %1425 = vst [vmem:[#allocation10 + $0x58] sm:$0xff] %v1393
    %1426 = vst [vmem:[#allocation10 + $0x60] sm:$0xff] %v1394
    %1427 = vst [vmem:[#allocation10 + $0x68] sm:$0xff] %v1395
    %1428 = vst [vmem:[#allocation10 + $0x70] sm:$0xff] %v1396
    %1429 = vst [vmem:[#allocation10 + $0x78] sm:$0xff] %v1397
    %1430 = vst [vmem:[#allocation10 + $0x80] sm:$0xff] %v1398
    %1431 = vst [vmem:[#allocation10 + $0x88] sm:$0xff] %v1399
    %1432 = vst [vmem:[#allocation10 + $0x90] sm:$0xff] %v1400
    %1433 = vst [vmem:[#allocation10 + $0x98] sm:$0xff] %v1401
    %1434 = vst [vmem:[#allocation10 + $0xa0] sm:$0xff] %v1402
    %1435 = vst [vmem:[#allocation10 + $0xa8] sm:$0xff] %v1403
    %1436 = vst [vmem:[#allocation10 + $0xb0] sm:$0xff] %v1404
    %1437 = vst [vmem:[#allocation10 + $0xb8] sm:$0xff] %v1405
    %1438 = vst [vmem:[#allocation10 + $0xc0] sm:$0xff] %v1406
    %1439 = vst [vmem:[#allocation10 + $0xc8] sm:$0xff] %v1407
    %1440 = vst [vmem:[#allocation10 + $0xd0] sm:$0xff] %v1408
    %1441 = vst [vmem:[#allocation10 + $0xd8] sm:$0xff] %v1409
    %1442 = vst [vmem:[#allocation10 + $0xe0] sm:$0xff] %v1410
    %1443 = vst [vmem:[#allocation10 + $0xe8] sm:$0xff] %v1411
    %1444 = vst [vmem:[#allocation10 + $0xf0] sm:$0xff] %v1412
    %1445 = vst [vmem:[#allocation10 + $0xf8] sm:$0xff] %v1413
    // Predicated region
    $region38: #{tpu_custom_call.1} parent=1 // pred_check
      _
    $region39: #{tpu_custom_call.1} parent=1 // pred_check_branch
      %1447 = sbr.rel (0) target = $region41
    $region40: #{tpu_custom_call.1} parent=1 // pred_region
      %1449 = vsyncadd [#allocation4], 0
      %s1450 = sshll.u32 [#allocation10], 4
      %s1451 = int_to_ptr.vmem [resolvable:$true] %s1450
      %s1452 = sshll.u32 %s5, 4
      %s1453 = int_to_ptr.hbm [resolvable:$true] %s1452
      %1458 = dma.vmem_to_hbm [thread:$0]  %s1451, 4096, %s1453, [#allocation4], 128, 128, 8
    $region41: #{tpu_custom_call.1} parent=1 // pred_fallthru
      _
    // Predicated region
    $region42: #{tpu_custom_call.1} parent=1 // pred_check
      _
    $region43: #{tpu_custom_call.1} parent=1 // pred_check_branch
      %1460 = sbr.rel (0) target = $region45
    $region44: #{tpu_custom_call.1} parent=1 // pred_region
      %1462 = dma.done [#allocation4], 4096
    $region45: #{tpu_custom_call.1} parent=1 // pred_fallthru
      _
    %1463 = vsyncpa [#allocation3], 1
    %1464 = vsyncpa [#allocation6], 1
    %1465 = vsyncpa [#allocation9], 1
    %1466 = vsyncpa [#allocation4], 1

// kernel: tpu_custom_call.1
$region0: #{tpu_custom_call.1}
  #allocation0 [shape = 'u32[]', space=smem, size = 0x4, offset = 0x4, fixed_abs, tag = 'smem constant byte address 0x4 - core index']
  #allocation1 [shape = 'u32[72,128]{1,0:T(1,128)}', space=vmem, size = 0x9000, scoped, tag = 'internal scratch']
  %s0 = inlined_call_operand.hbm [shape: f32[256,256], index: 0, kind: input, shape index: {}]
  %s1 = inlined_call_operand.hbm [shape: bf16[256,256], index: 1, kind: input, shape index: {}]
  %s2 = inlined_call_operand.hbm [shape: f32[1,256], index: 2, kind: input, shape index: {}]
  %s3 = inlined_call_operand.hbm [shape: bf16[256,256], index: 3, kind: input, shape index: {}]
  %s4 = inlined_call_operand.vmem [shape: f32[1,256], index: 4, kind: input, shape index: {}]
  %s5 = inlined_call_operand.hbm [shape: bf16[256,256], index: 5, kind: output, shape index: {}]
  %s6 = sld [smem:[#allocation0]]
  $region46: #{tpu_custom_call.1} parent=0
    _
  %s8 = ssub.s32 1, %s6
  %s9 = scalar_select 0, %s8, %s6
  $region1: #{tpu_custom_call.1} parent=0
    #allocation2 [shape = 'u8[262144]{0}', space=vmem, size = 0x40000, scoped, tag = 'input window, operand 0, single buffered']
    #allocation3 [shape = 's32[1]{0}', space=sflag, size = 0x4, scoped, tag = 'scoped memory for tpu_custom_call.1']
    #allocation4 [shape = 's32[1]{0}', space=sflag, size = 0x4, scoped, tag = 'scoped memory for tpu_custom_call.1']
    #allocation5 [shape = 'u8[131072]{0}', space=vmem, size = 0x20000, scoped, tag = 'input window, operand 1, single buffered']
    #allocation6 [shape = 's32[1]{0}', space=sflag, size = 0x4, scoped, tag = 'scoped memory for tpu_custom_call.1']
    #allocation7 [shape = 'u8[1024]{0}', space=vmem, size = 0x400, scoped, tag = 'input window, operand 2, single buffered']
    #allocation8 [shape = 'u8[131072]{0}', space=vmem, size = 0x20000, scoped, tag = 'input window, operand 3, single buffered']
    #allocation9 [shape = 's32[1]{0}', space=sflag, size = 0x4, scoped, tag = 'scoped memory for tpu_custom_call.1']
    #allocation10 [shape = 'u8[131072]{0}', space=vmem, size = 0x20000, scoped, tag = 'output window, operand 0, single buffered']
    %10 = vsyncpa [#allocation3], 0
    %11 = vsyncpa [#allocation6], 0
    %12 = vsyncpa [#allocation9], 0
    %13 = vsyncpa [#allocation4], 0
    // Predicated region
    $region2: #{tpu_custom_call.1} parent=1 // pred_check
      _
    $region3: #{tpu_custom_call.1} parent=1 // pred_check_branch
      %15 = sbr.rel (0) target = $region5
    $region4: #{tpu_custom_call.1} parent=1 // pred_region
      %17 = vsyncadd [#allocation3], 0
      %s18 = sshll.u32 %s0, 4
      %s19 = int_to_ptr.hbm [resolvable:$true] %s18
      %s20 = sshll.u32 [#allocation2], 4
      %s21 = int_to_ptr.vmem [resolvable:$true] %s20
      %26 = dma.hbm_to_vmem [thread:$0]  %s19, 8192, %s21, [#allocation3], 256, 256, 16
    $region5: #{tpu_custom_call.1} parent=1 // pred_fallthru
      _
    // Predicated region
    $region6: #{tpu_custom_call.1} parent=1 // pred_check
      _
    $region7: #{tpu_custom_call.1} parent=1 // pred_check_branch
      %28 = sbr.rel (0) target = $region9
    $region8: #{tpu_custom_call.1} parent=1 // pred_region
      %30 = vsyncadd [#allocation6], 0
      %s31 = sshll.u32 %s1, 4
      %s32 = int_to_ptr.hbm [resolvable:$true] %s31
      %s33 = sshll.u32 [#allocation5], 4
      %s34 = int_to_ptr.vmem [resolvable:$true] %s33
      %39 = dma.hbm_to_vmem [thread:$0]  %s32, 4096, %s34, [#allocation6], 128, 128, 8
    $region9: #{tpu_custom_call.1} parent=1 // pred_fallthru
      _
    // Predicated region
    $region10: #{tpu_custom_call.1} parent=1 // pred_check
      _
    $region11: #{tpu_custom_call.1} parent=1 // pred_check_branch
      %41 = sbr.rel (0) target = $region13
    $region12: #{tpu_custom_call.1} parent=1 // pred_region
      %43 = vsyncadd [#allocation6], 0
      %s45 = sshll.u32 %s2, 4
      %s46 = int_to_ptr.hbm [resolvable:$true] %s45
      %s47 = sshll.u32 [#allocation7], 4
      %s48 = int_to_ptr.vmem [resolvable:$true] %s47
      %50 = dma.hbm_to_vmem [thread:$0]  %s46, 32, %s48, [#allocation6]
    $region13: #{tpu_custom_call.1} parent=1 // pred_fallthru
      _
    // Predicated region
    $region14: #{tpu_custom_call.1} parent=1 // pred_check
      _
    $region15: #{tpu_custom_call.1} parent=1 // pred_check_branch
      %52 = sbr.rel (0) target = $region17
    $region16: #{tpu_custom_call.1} parent=1 // pred_region
      %54 = vsyncadd [#allocation9], 0
      %s55 = sshll.u32 %s3, 4
      %s56 = int_to_ptr.hbm [resolvable:$true] %s55
      %s57 = sshll.u32 [#allocation8], 4
      %s58 = int_to_ptr.vmem [resolvable:$true] %s57
      %63 = dma.hbm_to_vmem [thread:$0]  %s56, 4096, %s58, [#allocation9], 128, 128, 8
    $region17: #{tpu_custom_call.1} parent=1 // pred_fallthru
      _
    // Predicated region
    $region18: #{tpu_custom_call.1} parent=1 // pred_check
      _
    $region19: #{tpu_custom_call.1} parent=1 // pred_check_branch
      %65 = sbr.rel (0) target = $region21
    $region20: #{tpu_custom_call.1} parent=1 // pred_region
      _
    $region21: #{tpu_custom_call.1} parent=1 // pred_fallthru
      _
    // Predicated region
    $region22: #{tpu_custom_call.1} parent=1 // pred_check
      _
    $region23: #{tpu_custom_call.1} parent=1 // pred_check_branch
      %67 = sbr.rel (0) target = $region25
    $region24: #{tpu_custom_call.1} parent=1 // pred_region
      %69 = dma.done [#allocation3], 8192
    $region25: #{tpu_custom_call.1} parent=1 // pred_fallthru
      _
    // Predicated region
    $region26: #{tpu_custom_call.1} parent=1 // pred_check
      _
    $region27: #{tpu_custom_call.1} parent=1 // pred_check_branch
      %71 = sbr.rel (0) target = $region29
    $region28: #{tpu_custom_call.1} parent=1 // pred_region
      %73 = dma.done [#allocation6], 4096
    $region29: #{tpu_custom_call.1} parent=1 // pred_fallthru
      _
    // Predicated region
    $region30: #{tpu_custom_call.1} parent=1 // pred_check
      _
    $region31: #{tpu_custom_call.1} parent=1 // pred_check_branch
      %75 = sbr.rel (0) target = $region33
    $region32: #{tpu_custom_call.1} parent=1 // pred_region
      %77 = dma.done [#allocation6], 32
    $region33: #{tpu_custom_call.1} parent=1 // pred_fallthru
      _
    // Predicated region
    $region34: #{tpu_custom_call.1} parent=1 // pred_check
      _
    $region35: #{tpu_custom_call.1} parent=1 // pred_check_branch
      %79 = sbr.rel (0) target = $region37
    $region36: #{tpu_custom_call.1} parent=1 // pred_region
      %81 = dma.done [#allocation9], 4096
    $region37: #{tpu_custom_call.1} parent=1 // pred_fallthru
      _
    %v82 = vld [vmem:[#allocation2] sm:$0xff]
    %v83 = vld [vmem:[#allocation2 + $0x8] sm:$0xff]
    %v84 = vld [vmem:[#allocation2 + $0x10] sm:$0xff]
    %v85 = vld [vmem:[#allocation2 + $0x18] sm:$0xff]
    %v86 = vld [vmem:[#allocation2 + $0x20] sm:$0xff]
    %v87 = vld [vmem:[#allocation2 + $0x28] sm:$0xff]
    %v88 = vld [vmem:[#allocation2 + $0x30] sm:$0xff]
    %v89 = vld [vmem:[#allocation2 + $0x38] sm:$0xff]
    %v90 = vld [vmem:[#allocation2 + $0x40] sm:$0xff]
    %v91 = vld [vmem:[#allocation2 + $0x48] sm:$0xff]
    %v92 = vld [vmem:[#allocation2 + $0x50] sm:$0xff]
    %v93 = vld [vmem:[#allocation2 + $0x58] sm:$0xff]
    %v94 = vld [vmem:[#allocation2 + $0x60] sm:$0xff]
    %v95 = vld [vmem:[#allocation2 + $0x68] sm:$0xff]
    %v96 = vld [vmem:[#allocation2 + $0x70] sm:$0xff]
    %v97 = vld [vmem:[#allocation2 + $0x78] sm:$0xff]
    %v98 = vld [vmem:[#allocation2 + $0x80] sm:$0xff]
    %v99 = vld [vmem:[#allocation2 + $0x88] sm:$0xff]
    %v100 = vld [vmem:[#allocation2 + $0x90] sm:$0xff]
    %v101 = vld [vmem:[#allocation2 + $0x98] sm:$0xff]
    %v102 = vld [vmem:[#allocation2 + $0xa0] sm:$0xff]
    %v103 = vld [vmem:[#allocation2 + $0xa8] sm:$0xff]
    %v104 = vld [vmem:[#allocation2 + $0xb0] sm:$0xff]
    %v105 = vld [vmem:[#allocation2 + $0xb8] sm:$0xff]
    %v106 = vld [vmem:[#allocation2 + $0xc0] sm:$0xff]
    %v107 = vld [vmem:[#allocation2 + $0xc8] sm:$0xff]
    %v108 = vld [vmem:[#allocation2 + $0xd0] sm:$0xff]
    %v109 = vld [vmem:[#allocation2 + $0xd8] sm:$0xff]
    %v110 = vld [vmem:[#allocation2 + $0xe0] sm:$0xff]
    %v111 = vld [vmem:[#allocation2 + $0xe8] sm:$0xff]
    %v112 = vld [vmem:[#allocation2 + $0xf0] sm:$0xff]
    %v113 = vld [vmem:[#allocation2 + $0xf8] sm:$0xff]
    %v114 = vld [vmem:[#allocation2 + $0x100] sm:$0xff]
    %v115 = vld [vmem:[#allocation2 + $0x108] sm:$0xff]
    %v116 = vld [vmem:[#allocation2 + $0x110] sm:$0xff]
    %v117 = vld [vmem:[#allocation2 + $0x118] sm:$0xff]
    %v118 = vld [vmem:[#allocation2 + $0x120] sm:$0xff]
    %v119 = vld [vmem:[#allocation2 + $0x128] sm:$0xff]
    %v120 = vld [vmem:[#allocation2 + $0x130] sm:$0xff]
    %v121 = vld [vmem:[#allocation2 + $0x138] sm:$0xff]
    %v122 = vld [vmem:[#allocation2 + $0x140] sm:$0xff]
    %v123 = vld [vmem:[#allocation2 + $0x148] sm:$0xff]
    %v124 = vld [vmem:[#allocation2 + $0x150] sm:$0xff]
    %v125 = vld [vmem:[#allocation2 + $0x158] sm:$0xff]
    %v126 = vld [vmem:[#allocation2 + $0x160] sm:$0xff]
    %v127 = vld [vmem:[#allocation2 + $0x168] sm:$0xff]
    %v128 = vld [vmem:[#allocation2 + $0x170] sm:$0xff]
    %v129 = vld [vmem:[#allocation2 + $0x178] sm:$0xff]
    %v130 = vld [vmem:[#allocation2 + $0x180] sm:$0xff]
    %v131 = vld [vmem:[#allocation2 + $0x188] sm:$0xff]
    %v132 = vld [vmem:[#allocation2 + $0x190] sm:$0xff]
    %v133 = vld [vmem:[#allocation2 + $0x198] sm:$0xff]
    %v134 = vld [vmem:[#allocation2 + $0x1a0] sm:$0xff]
    %v135 = vld [vmem:[#allocation2 + $0x1a8] sm:$0xff]
    %v136 = vld [vmem:[#allocation2 + $0x1b0] sm:$0xff]
    %v137 = vld [vmem:[#allocation2 + $0x1b8] sm:$0xff]
    %v138 = vld [vmem:[#allocation2 + $0x1c0] sm:$0xff]
    %v139 = vld [vmem:[#allocation2 + $0x1c8] sm:$0xff]
    %v140 = vld [vmem:[#allocation2 + $0x1d0] sm:$0xff]
    %v141 = vld [vmem:[#allocation2 + $0x1d8] sm:$0xff]
    %v142 = vld [vmem:[#allocation2 + $0x1e0] sm:$0xff]
    %v143 = vld [vmem:[#allocation2 + $0x1e8] sm:$0xff]
    %v144 = vld [vmem:[#allocation2 + $0x1f0] sm:$0xff]
    %v145 = vld [vmem:[#allocation2 + $0x1f8] sm:$0xff]
    %v146 = vpack.c.bf16 %v84, %v82
    %v147 = vpack.c.bf16 %v85, %v83
    %v148 = vpack.c.bf16 %v88, %v86
    %v149 = vpack.c.bf16 %v89, %v87
    %v150 = vpack.c.bf16 %v92, %v90
    %v151 = vpack.c.bf16 %v93, %v91
    %v152 = vpack.c.bf16 %v96, %v94
    %v153 = vpack.c.bf16 %v97, %v95
    %v154 = vpack.c.bf16 %v100, %v98
    %v155 = vpack.c.bf16 %v101, %v99
    %v156 = vpack.c.bf16 %v104, %v102
    %v157 = vpack.c.bf16 %v105, %v103
    %v158 = vpack.c.bf16 %v108, %v106
    %v159 = vpack.c.bf16 %v109, %v107
    %v160 = vpack.c.bf16 %v112, %v110
    %v161 = vpack.c.bf16 %v113, %v111
    %v162 = vpack.c.bf16 %v116, %v114
    %v163 = vpack.c.bf16 %v117, %v115
    %v164 = vpack.c.bf16 %v120, %v118
    %v165 = vpack.c.bf16 %v121, %v119
    %v166 = vpack.c.bf16 %v124, %v122
    %v167 = vpack.c.bf16 %v125, %v123
    %v168 = vpack.c.bf16 %v128, %v126
    %v169 = vpack.c.bf16 %v129, %v127
    %v170 = vpack.c.bf16 %v132, %v130
    %v171 = vpack.c.bf16 %v133, %v131
    %v172 = vpack.c.bf16 %v136, %v134
    %v173 = vpack.c.bf16 %v137, %v135
    %v174 = vpack.c.bf16 %v140, %v138
    %v175 = vpack.c.bf16 %v141, %v139
    %v176 = vpack.c.bf16 %v144, %v142
    %v177 = vpack.c.bf16 %v145, %v143
    %v178 = vld [vmem:[#allocation5] sm:$0xff]
    %v179 = vld [vmem:[#allocation5 + $0x8] sm:$0xff]
    %v180 = vld [vmem:[#allocation5 + $0x10] sm:$0xff]
    %v181 = vld [vmem:[#allocation5 + $0x18] sm:$0xff]
    %v182 = vld [vmem:[#allocation5 + $0x20] sm:$0xff]
    %v183 = vld [vmem:[#allocation5 + $0x28] sm:$0xff]
    %v184 = vld [vmem:[#allocation5 + $0x30] sm:$0xff]
    %v185 = vld [vmem:[#allocation5 + $0x38] sm:$0xff]
    %v186 = vld [vmem:[#allocation5 + $0x40] sm:$0xff]
    %v187 = vld [vmem:[#allocation5 + $0x48] sm:$0xff]
    %v188 = vld [vmem:[#allocation5 + $0x50] sm:$0xff]
    %v189 = vld [vmem:[#allocation5 + $0x58] sm:$0xff]
    %v190 = vld [vmem:[#allocation5 + $0x60] sm:$0xff]
    %v191 = vld [vmem:[#allocation5 + $0x68] sm:$0xff]
    %v192 = vld [vmem:[#allocation5 + $0x70] sm:$0xff]
    %v193 = vld [vmem:[#allocation5 + $0x78] sm:$0xff]
    %v194 = vld [vmem:[#allocation5 + $0x80] sm:$0xff]
    %v195 = vld [vmem:[#allocation5 + $0x88] sm:$0xff]
    %v196 = vld [vmem:[#allocation5 + $0x90] sm:$0xff]
    %v197 = vld [vmem:[#allocation5 + $0x98] sm:$0xff]
    %v198 = vld [vmem:[#allocation5 + $0xa0] sm:$0xff]
    %v199 = vld [vmem:[#allocation5 + $0xa8] sm:$0xff]
    %v200 = vld [vmem:[#allocation5 + $0xb0] sm:$0xff]
    %v201 = vld [vmem:[#allocation5 + $0xb8] sm:$0xff]
    %v202 = vld [vmem:[#allocation5 + $0xc0] sm:$0xff]
    %v203 = vld [vmem:[#allocation5 + $0xc8] sm:$0xff]
    %v204 = vld [vmem:[#allocation5 + $0xd0] sm:$0xff]
    %v205 = vld [vmem:[#allocation5 + $0xd8] sm:$0xff]
    %v206 = vld [vmem:[#allocation5 + $0xe0] sm:$0xff]
    %v207 = vld [vmem:[#allocation5 + $0xe8] sm:$0xff]
    %v208 = vld [vmem:[#allocation5 + $0xf0] sm:$0xff]
    %v209 = vld [vmem:[#allocation5 + $0xf8] sm:$0xff]
    %v210 = vld [vmem:[#allocation7] sm:$0x3]
    %v212 = vperm.slane %v210, 0
    %v213 = vperm.slane %v210, 1
    %v248 = vunpack.c.l.b16 %v178
    %v249 = vunpack.c.h.b16 %v178
    %v250 = vunpack.c.l.b16 %v179
    %v251 = vunpack.c.h.b16 %v179
    %v252 = vunpack.c.l.b16 %v180
    %v253 = vunpack.c.h.b16 %v180
    %v254 = vunpack.c.l.b16 %v181
    %v255 = vunpack.c.h.b16 %v181
    %v256 = vunpack.c.l.b16 %v182
    %v257 = vunpack.c.h.b16 %v182
    %v258 = vunpack.c.l.b16 %v183
    %v259 = vunpack.c.h.b16 %v183
    %v260 = vunpack.c.l.b16 %v184
    %v261 = vunpack.c.h.b16 %v184
    %v262 = vunpack.c.l.b16 %v185
    %v263 = vunpack.c.h.b16 %v185
    %v264 = vunpack.c.l.b16 %v186
    %v265 = vunpack.c.h.b16 %v186
    %v266 = vunpack.c.l.b16 %v187
    %v267 = vunpack.c.h.b16 %v187
    %v268 = vunpack.c.l.b16 %v188
    %v269 = vunpack.c.h.b16 %v188
    %v270 = vunpack.c.l.b16 %v189
    %v271 = vunpack.c.h.b16 %v189
    %v272 = vunpack.c.l.b16 %v190
    %v273 = vunpack.c.h.b16 %v190
    %v274 = vunpack.c.l.b16 %v191
    %v275 = vunpack.c.h.b16 %v191
    %v276 = vunpack.c.l.b16 %v192
    %v277 = vunpack.c.h.b16 %v192
    %v278 = vunpack.c.l.b16 %v193
    %v279 = vunpack.c.h.b16 %v193
    %v280 = vunpack.c.l.b16 %v194
    %v281 = vunpack.c.h.b16 %v194
    %v282 = vunpack.c.l.b16 %v195
    %v283 = vunpack.c.h.b16 %v195
    %v284 = vunpack.c.l.b16 %v196
    %v285 = vunpack.c.h.b16 %v196
    %v286 = vunpack.c.l.b16 %v197
    %v287 = vunpack.c.h.b16 %v197
    %v288 = vunpack.c.l.b16 %v198
    %v289 = vunpack.c.h.b16 %v198
    %v290 = vunpack.c.l.b16 %v199
    %v291 = vunpack.c.h.b16 %v199
    %v292 = vunpack.c.l.b16 %v200
    %v293 = vunpack.c.h.b16 %v200
    %v294 = vunpack.c.l.b16 %v201
    %v295 = vunpack.c.h.b16 %v201
    %v296 = vunpack.c.l.b16 %v202
    %v297 = vunpack.c.h.b16 %v202
    %v298 = vunpack.c.l.b16 %v203
    %v299 = vunpack.c.h.b16 %v203
    %v300 = vunpack.c.l.b16 %v204
    %v301 = vunpack.c.h.b16 %v204
    %v302 = vunpack.c.l.b16 %v205
    %v303 = vunpack.c.h.b16 %v205
    %v304 = vunpack.c.l.b16 %v206
    %v305 = vunpack.c.h.b16 %v206
    %v306 = vunpack.c.l.b16 %v207
    %v307 = vunpack.c.h.b16 %v207
    %v308 = vunpack.c.l.b16 %v208
    %v309 = vunpack.c.h.b16 %v208
    %v310 = vunpack.c.l.b16 %v209
    %v311 = vunpack.c.h.b16 %v209
    %v312 = vpack.c.b16 %v250, %v248
    %v313 = vpack.c.b16 %v251, %v249
    %v314 = vpack.c.b16 %v254, %v252
    %v315 = vpack.c.b16 %v255, %v253
    %v316 = vpack.c.b16 %v258, %v256
    %v317 = vpack.c.b16 %v259, %v257
    %v318 = vpack.c.b16 %v262, %v260
    %v319 = vpack.c.b16 %v263, %v261
    %v320 = vpack.c.b16 %v266, %v264
    %v321 = vpack.c.b16 %v267, %v265
    %v322 = vpack.c.b16 %v270, %v268
    %v323 = vpack.c.b16 %v271, %v269
    %v324 = vpack.c.b16 %v274, %v272
    %v325 = vpack.c.b16 %v275, %v273
    %v326 = vpack.c.b16 %v278, %v276
    %v327 = vpack.c.b16 %v279, %v277
    %v328 = vpack.c.b16 %v282, %v280
    %v329 = vpack.c.b16 %v283, %v281
    %v330 = vpack.c.b16 %v286, %v284
    %v331 = vpack.c.b16 %v287, %v285
    %v332 = vpack.c.b16 %v290, %v288
    %v333 = vpack.c.b16 %v291, %v289
    %v334 = vpack.c.b16 %v294, %v292
    %v335 = vpack.c.b16 %v295, %v293
    %v336 = vpack.c.b16 %v298, %v296
    %v337 = vpack.c.b16 %v299, %v297
    %v338 = vpack.c.b16 %v302, %v300
    %v339 = vpack.c.b16 %v303, %v301
    %v340 = vpack.c.b16 %v306, %v304
    %v341 = vpack.c.b16 %v307, %v305
    %v342 = vpack.c.b16 %v310, %v308
    %v343 = vpack.c.b16 %v311, %v309
    %376 = vmatpush.bf16.msra.mxu0 %v326
    %377 = vmatpush.bf16.msra.mxu0 %v324
    %378 = vmatpush.bf16.msra.mxu0 %v322
    %379 = vmatpush.bf16.msra.mxu0 %v320
    %380 = vmatpush.bf16.msra.mxu0 %v318
    %381 = vmatpush.bf16.msra.mxu0 %v316
    %382 = vmatpush.bf16.msra.mxu0 %v314
    %383 = vmatpush.bf16.msra.mxu0 %v312
    %384 = vmatmul.bf16.gmra.mxu0 %v146
    %v385 = vpop.f32.mrf.mxu0
    %v386 = vadd.f32 %v212, %v385
    %v387 = vpop.f32.mrf.mxu0
    %v388 = vadd.f32 %v212, %v387
    %389 = vmatmul.bf16.gmra.mxu0 %v148
    %v390 = vpop.f32.mrf.mxu0
    %v391 = vadd.f32 %v212, %v390
    %v392 = vpop.f32.mrf.mxu0
    %v393 = vadd.f32 %v212, %v392
    %394 = vmatmul.bf16.gmra.mxu0 %v150
    %v395 = vpop.f32.mrf.mxu0
    %v396 = vadd.f32 %v212, %v395
    %v397 = vpop.f32.mrf.mxu0
    %v398 = vadd.f32 %v212, %v397
    %399 = vmatmul.bf16.gmra.mxu0 %v152
    %v400 = vpop.f32.mrf.mxu0
    %v401 = vadd.f32 %v212, %v400
    %v402 = vpop.f32.mrf.mxu0
    %v403 = vadd.f32 %v212, %v402
    %404 = vmatmul.bf16.gmra.mxu0 %v154
    %v405 = vpop.f32.mrf.mxu0
    %v406 = vadd.f32 %v212, %v405
    %v407 = vpop.f32.mrf.mxu0
    %v408 = vadd.f32 %v212, %v407
    %409 = vmatmul.bf16.gmra.mxu0 %v156
    %v410 = vpop.f32.mrf.mxu0
    %v411 = vadd.f32 %v212, %v410
    %v412 = vpop.f32.mrf.mxu0
    %v413 = vadd.f32 %v212, %v412
    %414 = vmatmul.bf16.gmra.mxu0 %v158
    %v415 = vpop.f32.mrf.mxu0
    %v416 = vadd.f32 %v212, %v415
    %v417 = vpop.f32.mrf.mxu0
    %v418 = vadd.f32 %v212, %v417
    %419 = vmatmul.bf16.gmra.mxu0 %v160
    %v420 = vpop.f32.mrf.mxu0
    %v421 = vadd.f32 %v212, %v420
    %v422 = vpop.f32.mrf.mxu0
    %v423 = vadd.f32 %v212, %v422
    %424 = vmatmul.bf16.gmra.mxu0 %v162
    %v425 = vpop.f32.mrf.mxu0
    %v426 = vadd.f32 %v212, %v425
    %v427 = vpop.f32.mrf.mxu0
    %v428 = vadd.f32 %v212, %v427
    %429 = vmatmul.bf16.gmra.mxu0 %v164
    %v430 = vpop.f32.mrf.mxu0
    %v431 = vadd.f32 %v212, %v430
    %v432 = vpop.f32.mrf.mxu0
    %v433 = vadd.f32 %v212, %v432
    %434 = vmatmul.bf16.gmra.mxu0 %v166
    %v435 = vpop.f32.mrf.mxu0
    %v436 = vadd.f32 %v212, %v435
    %v437 = vpop.f32.mrf.mxu0
    %v438 = vadd.f32 %v212, %v437
    %439 = vmatmul.bf16.gmra.mxu0 %v168
    %v440 = vpop.f32.mrf.mxu0
    %v441 = vadd.f32 %v212, %v440
    %v442 = vpop.f32.mrf.mxu0
    %v443 = vadd.f32 %v212, %v442
    %444 = vmatmul.bf16.gmra.mxu0 %v170
    %v445 = vpop.f32.mrf.mxu0
    %v446 = vadd.f32 %v212, %v445
    %v447 = vpop.f32.mrf.mxu0
    %v448 = vadd.f32 %v212, %v447
    %449 = vmatmul.bf16.gmra.mxu0 %v172
    %v450 = vpop.f32.mrf.mxu0
    %v451 = vadd.f32 %v212, %v450
    %v452 = vpop.f32.mrf.mxu0
    %v453 = vadd.f32 %v212, %v452
    %454 = vmatmul.bf16.gmra.mxu0 %v174
    %v455 = vpop.f32.mrf.mxu0
    %v456 = vadd.f32 %v212, %v455
    %v457 = vpop.f32.mrf.mxu0
    %v458 = vadd.f32 %v212, %v457
    %459 = vmatmul.bf16.gmra.mxu0 %v176
    %v460 = vpop.f32.mrf.mxu0
    %v461 = vadd.f32 %v212, %v460
    %v462 = vpop.f32.mrf.mxu0
    %v463 = vadd.f32 %v212, %v462
    %464 = vdwg.mxu0
    %465 = vmatpush.bf16.msra.mxu0 %v342
    %466 = vmatpush.bf16.msra.mxu0 %v340
    %467 = vmatpush.bf16.msra.mxu0 %v338
    %468 = vmatpush.bf16.msra.mxu0 %v336
    %469 = vmatpush.bf16.msra.mxu0 %v334
    %470 = vmatpush.bf16.msra.mxu0 %v332
    %471 = vmatpush.bf16.msra.mxu0 %v330
    %472 = vmatpush.bf16.msra.mxu0 %v328
    %473 = vmatmul.bf16.gmra.mxu0 %v147
    %v474 = vpop.f32.mrf.mxu0
    %v475 = vadd.f32 %v386, %v474
    %v476 = vpop.f32.mrf.mxu0
    %v477 = vadd.f32 %v388, %v476
    %478 = vmatmul.bf16.gmra.mxu0 %v149
    %v479 = vpop.f32.mrf.mxu0
    %v480 = vadd.f32 %v391, %v479
    %v481 = vpop.f32.mrf.mxu0
    %v482 = vadd.f32 %v393, %v481
    %483 = vmatmul.bf16.gmra.mxu0 %v151
    %v484 = vpop.f32.mrf.mxu0
    %v485 = vadd.f32 %v396, %v484
    %v486 = vpop.f32.mrf.mxu0
    %v487 = vadd.f32 %v398, %v486
    %488 = vmatmul.bf16.gmra.mxu0 %v153
    %v489 = vpop.f32.mrf.mxu0
    %v490 = vadd.f32 %v401, %v489
    %v491 = vpop.f32.mrf.mxu0
    %v492 = vadd.f32 %v403, %v491
    %493 = vmatmul.bf16.gmra.mxu0 %v155
    %v494 = vpop.f32.mrf.mxu0
    %v495 = vadd.f32 %v406, %v494
    %v496 = vpop.f32.mrf.mxu0
    %v497 = vadd.f32 %v408, %v496
    %498 = vmatmul.bf16.gmra.mxu0 %v157
    %v499 = vpop.f32.mrf.mxu0
    %v500 = vadd.f32 %v411, %v499
    %v501 = vpop.f32.mrf.mxu0
    %v502 = vadd.f32 %v413, %v501
    %503 = vmatmul.bf16.gmra.mxu0 %v159
    %v504 = vpop.f32.mrf.mxu0
    %v505 = vadd.f32 %v416, %v504
    %v506 = vpop.f32.mrf.mxu0
    %v507 = vadd.f32 %v418, %v506
    %508 = vmatmul.bf16.gmra.mxu0 %v161
    %v509 = vpop.f32.mrf.mxu0
    %v510 = vadd.f32 %v421, %v509
    %v511 = vpop.f32.mrf.mxu0
    %v512 = vadd.f32 %v423, %v511
    %513 = vmatmul.bf16.gmra.mxu0 %v163
    %v514 = vpop.f32.mrf.mxu0
    %v515 = vadd.f32 %v426, %v514
    %v516 = vpop.f32.mrf.mxu0
    %v517 = vadd.f32 %v428, %v516
    %518 = vmatmul.bf16.gmra.mxu0 %v165
    %v519 = vpop.f32.mrf.mxu0
    %v520 = vadd.f32 %v431, %v519
    %v521 = vpop.f32.mrf.mxu0
    %v522 = vadd.f32 %v433, %v521
    %523 = vmatmul.bf16.gmra.mxu0 %v167
    %v524 = vpop.f32.mrf.mxu0
    %v525 = vadd.f32 %v436, %v524
    %v526 = vpop.f32.mrf.mxu0
    %v527 = vadd.f32 %v438, %v526
    %528 = vmatmul.bf16.gmra.mxu0 %v169
    %v529 = vpop.f32.mrf.mxu0
    %v530 = vadd.f32 %v441, %v529
    %v531 = vpop.f32.mrf.mxu0
    %v532 = vadd.f32 %v443, %v531
    %533 = vmatmul.bf16.gmra.mxu0 %v171
    %v534 = vpop.f32.mrf.mxu0
    %v535 = vadd.f32 %v446, %v534
    %v536 = vpop.f32.mrf.mxu0
    %v537 = vadd.f32 %v448, %v536
    %538 = vmatmul.bf16.gmra.mxu0 %v173
    %v539 = vpop.f32.mrf.mxu0
    %v540 = vadd.f32 %v451, %v539
    %v541 = vpop.f32.mrf.mxu0
    %v542 = vadd.f32 %v453, %v541
    %543 = vmatmul.bf16.gmra.mxu0 %v175
    %v544 = vpop.f32.mrf.mxu0
    %v545 = vadd.f32 %v456, %v544
    %v546 = vpop.f32.mrf.mxu0
    %v547 = vadd.f32 %v458, %v546
    %548 = vmatmul.bf16.gmra.mxu0 %v177
    %v549 = vpop.f32.mrf.mxu0
    %v550 = vadd.f32 %v461, %v549
    %v551 = vpop.f32.mrf.mxu0
    %v552 = vadd.f32 %v463, %v551
    %553 = vdwg.mxu0
    %554 = vmatpush.bf16.msra.mxu0 %v327
    %555 = vmatpush.bf16.msra.mxu0 %v325
    %556 = vmatpush.bf16.msra.mxu0 %v323
    %557 = vmatpush.bf16.msra.mxu0 %v321
    %558 = vmatpush.bf16.msra.mxu0 %v319
    %559 = vmatpush.bf16.msra.mxu0 %v317
    %560 = vmatpush.bf16.msra.mxu0 %v315
    %561 = vmatpush.bf16.msra.mxu0 %v313
    %562 = vmatmul.bf16.gmra.mxu0 %v146
    %v563 = vpop.f32.mrf.mxu0
    %v564 = vadd.f32 %v213, %v563
    %v565 = vpop.f32.mrf.mxu0
    %v566 = vadd.f32 %v213, %v565
    %567 = vmatmul.bf16.gmra.mxu0 %v148
    %v568 = vpop.f32.mrf.mxu0
    %v569 = vadd.f32 %v213, %v568
    %v570 = vpop.f32.mrf.mxu0
    %v571 = vadd.f32 %v213, %v570
    %572 = vmatmul.bf16.gmra.mxu0 %v150
    %v573 = vpop.f32.mrf.mxu0
    %v574 = vadd.f32 %v213, %v573
    %v575 = vpop.f32.mrf.mxu0
    %v576 = vadd.f32 %v213, %v575
    %577 = vmatmul.bf16.gmra.mxu0 %v152
    %v578 = vpop.f32.mrf.mxu0
    %v579 = vadd.f32 %v213, %v578
    %v580 = vpop.f32.mrf.mxu0
    %v581 = vadd.f32 %v213, %v580
    %582 = vmatmul.bf16.gmra.mxu0 %v154
    %v583 = vpop.f32.mrf.mxu0
    %v584 = vadd.f32 %v213, %v583
    %v585 = vpop.f32.mrf.mxu0
    %v586 = vadd.f32 %v213, %v585
    %587 = vmatmul.bf16.gmra.mxu0 %v156
    %v588 = vpop.f32.mrf.mxu0
    %v589 = vadd.f32 %v213, %v588
    %v590 = vpop.f32.mrf.mxu0
    %v591 = vadd.f32 %v213, %v590
    %592 = vmatmul.bf16.gmra.mxu0 %v158
    %v593 = vpop.f32.mrf.mxu0
    %v594 = vadd.f32 %v213, %v593
    %v595 = vpop.f32.mrf.mxu0
    %v596 = vadd.f32 %v213, %v595
    %597 = vmatmul.bf16.gmra.mxu0 %v160
    %v598 = vpop.f32.mrf.mxu0
    %v599 = vadd.f32 %v213, %v598
    %v600 = vpop.f32.mrf.mxu0
    %v601 = vadd.f32 %v213, %v600
    %602 = vmatmul.bf16.gmra.mxu0 %v162
    %v603 = vpop.f32.mrf.mxu0
    %v604 = vadd.f32 %v213, %v603
    %v605 = vpop.f32.mrf.mxu0
    %v606 = vadd.f32 %v213, %v605
    %607 = vmatmul.bf16.gmra.mxu0 %v164
    %v608 = vpop.f32.mrf.mxu0
    %v609 = vadd.f32 %v213, %v608
    %v610 = vpop.f32.mrf.mxu0
    %v611 = vadd.f32 %v213, %v610
    %612 = vmatmul.bf16.gmra.mxu0 %v166
    %v613 = vpop.f32.mrf.mxu0
    %v614 = vadd.f32 %v213, %v613
    %v615 = vpop.f32.mrf.mxu0
    %v616 = vadd.f32 %v213, %v615
    %617 = vmatmul.bf16.gmra.mxu0 %v168
    %v618 = vpop.f32.mrf.mxu0
    %v619 = vadd.f32 %v213, %v618
    %v620 = vpop.f32.mrf.mxu0
    %v621 = vadd.f32 %v213, %v620
    %622 = vmatmul.bf16.gmra.mxu0 %v170
    %v623 = vpop.f32.mrf.mxu0
    %v624 = vadd.f32 %v213, %v623
    %v625 = vpop.f32.mrf.mxu0
    %v626 = vadd.f32 %v213, %v625
    %627 = vmatmul.bf16.gmra.mxu0 %v172
    %v628 = vpop.f32.mrf.mxu0
    %v629 = vadd.f32 %v213, %v628
    %v630 = vpop.f32.mrf.mxu0
    %v631 = vadd.f32 %v213, %v630
    %632 = vmatmul.bf16.gmra.mxu0 %v174
    %v633 = vpop.f32.mrf.mxu0
    %v634 = vadd.f32 %v213, %v633
    %v635 = vpop.f32.mrf.mxu0
    %v636 = vadd.f32 %v213, %v635
    %637 = vmatmul.bf16.gmra.mxu0 %v176
    %v638 = vpop.f32.mrf.mxu0
    %v639 = vadd.f32 %v213, %v638
    %v640 = vpop.f32.mrf.mxu0
    %v641 = vadd.f32 %v213, %v640
    %642 = vdwg.mxu0
    %643 = vmatpush.bf16.msra.mxu0 %v343
    %644 = vmatpush.bf16.msra.mxu0 %v341
    %645 = vmatpush.bf16.msra.mxu0 %v339
    %646 = vmatpush.bf16.msra.mxu0 %v337
    %647 = vmatpush.bf16.msra.mxu0 %v335
    %648 = vmatpush.bf16.msra.mxu0 %v333
    %649 = vmatpush.bf16.msra.mxu0 %v331
    %650 = vmatpush.bf16.msra.mxu0 %v329
    %651 = vmatmul.bf16.gmra.mxu0 %v147
    %v652 = vpop.f32.mrf.mxu0
    %v653 = vadd.f32 %v564, %v652
    %v654 = vpop.f32.mrf.mxu0
    %v655 = vadd.f32 %v566, %v654
    %656 = vmatmul.bf16.gmra.mxu0 %v149
    %v657 = vpop.f32.mrf.mxu0
    %v658 = vadd.f32 %v569, %v657
    %v659 = vpop.f32.mrf.mxu0
    %v660 = vadd.f32 %v571, %v659
    %661 = vmatmul.bf16.gmra.mxu0 %v151
    %v662 = vpop.f32.mrf.mxu0
    %v663 = vadd.f32 %v574, %v662
    %v664 = vpop.f32.mrf.mxu0
    %v665 = vadd.f32 %v576, %v664
    %666 = vmatmul.bf16.gmra.mxu0 %v153
    %v667 = vpop.f32.mrf.mxu0
    %v668 = vadd.f32 %v579, %v667
    %v669 = vpop.f32.mrf.mxu0
    %v670 = vadd.f32 %v581, %v669
    %671 = vmatmul.bf16.gmra.mxu0 %v155
    %v672 = vpop.f32.mrf.mxu0
    %v673 = vadd.f32 %v584, %v672
    %v674 = vpop.f32.mrf.mxu0
    %v675 = vadd.f32 %v586, %v674
    %676 = vmatmul.bf16.gmra.mxu0 %v157
    %v677 = vpop.f32.mrf.mxu0
    %v678 = vadd.f32 %v589, %v677
    %v679 = vpop.f32.mrf.mxu0
    %v680 = vadd.f32 %v591, %v679
    %681 = vmatmul.bf16.gmra.mxu0 %v159
    %v682 = vpop.f32.mrf.mxu0
    %v683 = vadd.f32 %v594, %v682
    %v684 = vpop.f32.mrf.mxu0
    %v685 = vadd.f32 %v596, %v684
    %686 = vmatmul.bf16.gmra.mxu0 %v161
    %v687 = vpop.f32.mrf.mxu0
    %v688 = vadd.f32 %v599, %v687
    %v689 = vpop.f32.mrf.mxu0
    %v690 = vadd.f32 %v601, %v689
    %691 = vmatmul.bf16.gmra.mxu0 %v163
    %v692 = vpop.f32.mrf.mxu0
    %v693 = vadd.f32 %v604, %v692
    %v694 = vpop.f32.mrf.mxu0
    %v695 = vadd.f32 %v606, %v694
    %696 = vmatmul.bf16.gmra.mxu0 %v165
    %v697 = vpop.f32.mrf.mxu0
    %v698 = vadd.f32 %v609, %v697
    %v699 = vpop.f32.mrf.mxu0
    %v700 = vadd.f32 %v611, %v699
    %701 = vmatmul.bf16.gmra.mxu0 %v167
    %v702 = vpop.f32.mrf.mxu0
    %v703 = vadd.f32 %v614, %v702
    %v704 = vpop.f32.mrf.mxu0
    %v705 = vadd.f32 %v616, %v704
    %706 = vmatmul.bf16.gmra.mxu0 %v169
    %v707 = vpop.f32.mrf.mxu0
    %v708 = vadd.f32 %v619, %v707
    %v709 = vpop.f32.mrf.mxu0
    %v710 = vadd.f32 %v621, %v709
    %711 = vmatmul.bf16.gmra.mxu0 %v171
    %v712 = vpop.f32.mrf.mxu0
    %v713 = vadd.f32 %v624, %v712
    %v714 = vpop.f32.mrf.mxu0
    %v715 = vadd.f32 %v626, %v714
    %716 = vmatmul.bf16.gmra.mxu0 %v173
    %v717 = vpop.f32.mrf.mxu0
    %v718 = vadd.f32 %v629, %v717
    %v719 = vpop.f32.mrf.mxu0
    %v720 = vadd.f32 %v631, %v719
    %721 = vmatmul.bf16.gmra.mxu0 %v175
    %v722 = vpop.f32.mrf.mxu0
    %v723 = vadd.f32 %v634, %v722
    %v724 = vpop.f32.mrf.mxu0
    %v725 = vadd.f32 %v636, %v724
    %726 = vmatmul.bf16.gmra.mxu0 %v177
    %v727 = vpop.f32.mrf.mxu0
    %v728 = vadd.f32 %v639, %v727
    %v729 = vpop.f32.mrf.mxu0
    %v730 = vadd.f32 %v641, %v729
    %731 = vdwg.mxu0
    %v732 = vmax.f32 %v475, 0.0
    %v733 = vmax.f32 %v653, 0.0
    %v734 = vmax.f32 %v477, 0.0
    %v735 = vmax.f32 %v655, 0.0
    %v736 = vmax.f32 %v480, 0.0
    %v737 = vmax.f32 %v658, 0.0
    %v738 = vmax.f32 %v482, 0.0
    %v739 = vmax.f32 %v660, 0.0
    %v740 = vmax.f32 %v485, 0.0
    %v741 = vmax.f32 %v663, 0.0
    %v742 = vmax.f32 %v487, 0.0
    %v743 = vmax.f32 %v665, 0.0
    %v744 = vmax.f32 %v490, 0.0
    %v745 = vmax.f32 %v668, 0.0
    %v746 = vmax.f32 %v492, 0.0
    %v747 = vmax.f32 %v670, 0.0
    %v748 = vmax.f32 %v495, 0.0
    %v749 = vmax.f32 %v673, 0.0
    %v750 = vmax.f32 %v497, 0.0
    %v751 = vmax.f32 %v675, 0.0
    %v752 = vmax.f32 %v500, 0.0
    %v753 = vmax.f32 %v678, 0.0
    %v754 = vmax.f32 %v502, 0.0
    %v755 = vmax.f32 %v680, 0.0
    %v756 = vmax.f32 %v505, 0.0
    %v757 = vmax.f32 %v683, 0.0
    %v758 = vmax.f32 %v507, 0.0
    %v759 = vmax.f32 %v685, 0.0
    %v760 = vmax.f32 %v510, 0.0
    %v761 = vmax.f32 %v688, 0.0
    %v762 = vmax.f32 %v512, 0.0
    %v763 = vmax.f32 %v690, 0.0
    %v764 = vmax.f32 %v515, 0.0
    %v765 = vmax.f32 %v693, 0.0
    %v766 = vmax.f32 %v517, 0.0
    %v767 = vmax.f32 %v695, 0.0
    %v768 = vmax.f32 %v520, 0.0
    %v769 = vmax.f32 %v698, 0.0
    %v770 = vmax.f32 %v522, 0.0
    %v771 = vmax.f32 %v700, 0.0
    %v772 = vmax.f32 %v525, 0.0
    %v773 = vmax.f32 %v703, 0.0
    %v774 = vmax.f32 %v527, 0.0
    %v775 = vmax.f32 %v705, 0.0
    %v776 = vmax.f32 %v530, 0.0
    %v777 = vmax.f32 %v708, 0.0
    %v778 = vmax.f32 %v532, 0.0
    %v779 = vmax.f32 %v710, 0.0
    %v780 = vmax.f32 %v535, 0.0
    %v781 = vmax.f32 %v713, 0.0
    %v782 = vmax.f32 %v537, 0.0
    %v783 = vmax.f32 %v715, 0.0
    %v784 = vmax.f32 %v540, 0.0
    %v785 = vmax.f32 %v718, 0.0
    %v786 = vmax.f32 %v542, 0.0
    %v787 = vmax.f32 %v720, 0.0
    %v788 = vmax.f32 %v545, 0.0
    %v789 = vmax.f32 %v723, 0.0
    %v790 = vmax.f32 %v547, 0.0
    %v791 = vmax.f32 %v725, 0.0
    %v792 = vmax.f32 %v550, 0.0
    %v793 = vmax.f32 %v728, 0.0
    %v794 = vmax.f32 %v552, 0.0
    %v795 = vmax.f32 %v730, 0.0
    %v796 = vpack.c.bf16 %v734, %v732
    %v797 = vpack.c.bf16 %v735, %v733
    %v798 = vpack.c.bf16 %v738, %v736
    %v799 = vpack.c.bf16 %v739, %v737
    %v800 = vpack.c.bf16 %v742, %v740
    %v801 = vpack.c.bf16 %v743, %v741
    %v802 = vpack.c.bf16 %v746, %v744
    %v803 = vpack.c.bf16 %v747, %v745
    %v804 = vpack.c.bf16 %v750, %v748
    %v805 = vpack.c.bf16 %v751, %v749
    %v806 = vpack.c.bf16 %v754, %v752
    %v807 = vpack.c.bf16 %v755, %v753
    %v808 = vpack.c.bf16 %v758, %v756
    %v809 = vpack.c.bf16 %v759, %v757
    %v810 = vpack.c.bf16 %v762, %v760
    %v811 = vpack.c.bf16 %v763, %v761
    %v812 = vpack.c.bf16 %v766, %v764
    %v813 = vpack.c.bf16 %v767, %v765
    %v814 = vpack.c.bf16 %v770, %v768
    %v815 = vpack.c.bf16 %v771, %v769
    %v816 = vpack.c.bf16 %v774, %v772
    %v817 = vpack.c.bf16 %v775, %v773
    %v818 = vpack.c.bf16 %v778, %v776
    %v819 = vpack.c.bf16 %v779, %v777
    %v820 = vpack.c.bf16 %v782, %v780
    %v821 = vpack.c.bf16 %v783, %v781
    %v822 = vpack.c.bf16 %v786, %v784
    %v823 = vpack.c.bf16 %v787, %v785
    %v824 = vpack.c.bf16 %v790, %v788
    %v825 = vpack.c.bf16 %v791, %v789
    %v826 = vpack.c.bf16 %v794, %v792
    %v827 = vpack.c.bf16 %v795, %v793
    %v828 = vld [vmem:[#allocation8] sm:$0xff]
    %v829 = vld [vmem:[#allocation8 + $0x8] sm:$0xff]
    %v830 = vld [vmem:[#allocation8 + $0x10] sm:$0xff]
    %v831 = vld [vmem:[#allocation8 + $0x18] sm:$0xff]
    %v832 = vld [vmem:[#allocation8 + $0x20] sm:$0xff]
    %v833 = vld [vmem:[#allocation8 + $0x28] sm:$0xff]
    %v834 = vld [vmem:[#allocation8 + $0x30] sm:$0xff]
    %v835 = vld [vmem:[#allocation8 + $0x38] sm:$0xff]
    %v836 = vld [vmem:[#allocation8 + $0x40] sm:$0xff]
    %v837 = vld [vmem:[#allocation8 + $0x48] sm:$0xff]
    %v838 = vld [vmem:[#allocation8 + $0x50] sm:$0xff]
    %v839 = vld [vmem:[#allocation8 + $0x58] sm:$0xff]
    %v840 = vld [vmem:[#allocation8 + $0x60] sm:$0xff]
    %v841 = vld [vmem:[#allocation8 + $0x68] sm:$0xff]
    %v842 = vld [vmem:[#allocation8 + $0x70] sm:$0xff]
    %v843 = vld [vmem:[#allocation8 + $0x78] sm:$0xff]
    %v844 = vld [vmem:[#allocation8 + $0x80] sm:$0xff]
    %v845 = vld [vmem:[#allocation8 + $0x88] sm:$0xff]
    %v846 = vld [vmem:[#allocation8 + $0x90] sm:$0xff]
    %v847 = vld [vmem:[#allocation8 + $0x98] sm:$0xff]
    %v848 = vld [vmem:[#allocation8 + $0xa0] sm:$0xff]
    %v849 = vld [vmem:[#allocation8 + $0xa8] sm:$0xff]
    %v850 = vld [vmem:[#allocation8 + $0xb0] sm:$0xff]
    %v851 = vld [vmem:[#allocation8 + $0xb8] sm:$0xff]
    %v852 = vld [vmem:[#allocation8 + $0xc0] sm:$0xff]
    %v853 = vld [vmem:[#allocation8 + $0xc8] sm:$0xff]
    %v854 = vld [vmem:[#allocation8 + $0xd0] sm:$0xff]
    %v855 = vld [vmem:[#allocation8 + $0xd8] sm:$0xff]
    %v856 = vld [vmem:[#allocation8 + $0xe0] sm:$0xff]
    %v857 = vld [vmem:[#allocation8 + $0xe8] sm:$0xff]
    %v858 = vld [vmem:[#allocation8 + $0xf0] sm:$0xff]
    %v859 = vld [vmem:[#allocation8 + $0xf8] sm:$0xff]
    %v860 = vld [vmem:[%s4] sm:$0x3]
    %v862 = vperm.slane %v860, 0
    %v863 = vperm.slane %v860, 1
    %v898 = vunpack.c.l.b16 %v828
    %v899 = vunpack.c.h.b16 %v828
    %v900 = vunpack.c.l.b16 %v829
    %v901 = vunpack.c.h.b16 %v829
    %v902 = vunpack.c.l.b16 %v830
    %v903 = vunpack.c.h.b16 %v830
    %v904 = vunpack.c.l.b16 %v831
    %v905 = vunpack.c.h.b16 %v831
    %v906 = vunpack.c.l.b16 %v832
    %v907 = vunpack.c.h.b16 %v832
    %v908 = vunpack.c.l.b16 %v833
    %v909 = vunpack.c.h.b16 %v833
    %v910 = vunpack.c.l.b16 %v834
    %v911 = vunpack.c.h.b16 %v834
    %v912 = vunpack.c.l.b16 %v835
    %v913 = vunpack.c.h.b16 %v835
    %v914 = vunpack.c.l.b16 %v836
    %v915 = vunpack.c.h.b16 %v836
    %v916 = vunpack.c.l.b16 %v837
    %v917 = vunpack.c.h.b16 %v837
    %v918 = vunpack.c.l.b16 %v838
    %v919 = vunpack.c.h.b16 %v838
    %v920 = vunpack.c.l.b16 %v839
    %v921 = vunpack.c.h.b16 %v839
    %v922 = vunpack.c.l.b16 %v840
    %v923 = vunpack.c.h.b16 %v840
    %v924 = vunpack.c.l.b16 %v841
    %v925 = vunpack.c.h.b16 %v841
    %v926 = vunpack.c.l.b16 %v842
    %v927 = vunpack.c.h.b16 %v842
    %v928 = vunpack.c.l.b16 %v843
    %v929 = vunpack.c.h.b16 %v843
    %v930 = vunpack.c.l.b16 %v844
    %v931 = vunpack.c.h.b16 %v844
    %v932 = vunpack.c.l.b16 %v845
    %v933 = vunpack.c.h.b16 %v845
    %v934 = vunpack.c.l.b16 %v846
    %v935 = vunpack.c.h.b16 %v846
    %v936 = vunpack.c.l.b16 %v847
    %v937 = vunpack.c.h.b16 %v847
    %v938 = vunpack.c.l.b16 %v848
    %v939 = vunpack.c.h.b16 %v848
    %v940 = vunpack.c.l.b16 %v849
    %v941 = vunpack.c.h.b16 %v849
    %v942 = vunpack.c.l.b16 %v850
    %v943 = vunpack.c.h.b16 %v850
    %v944 = vunpack.c.l.b16 %v851
    %v945 = vunpack.c.h.b16 %v851
    %v946 = vunpack.c.l.b16 %v852
    %v947 = vunpack.c.h.b16 %v852
    %v948 = vunpack.c.l.b16 %v853
    %v949 = vunpack.c.h.b16 %v853
    %v950 = vunpack.c.l.b16 %v854
    %v951 = vunpack.c.h.b16 %v854
    %v952 = vunpack.c.l.b16 %v855
    %v953 = vunpack.c.h.b16 %v855
    %v954 = vunpack.c.l.b16 %v856
    %v955 = vunpack.c.h.b16 %v856
    %v956 = vunpack.c.l.b16 %v857
    %v957 = vunpack.c.h.b16 %v857
    %v958 = vunpack.c.l.b16 %v858
    %v959 = vunpack.c.h.b16 %v858
    %v960 = vunpack.c.l.b16 %v859
    %v961 = vunpack.c.h.b16 %v859
    %v962 = vpack.c.b16 %v900, %v898
    %v963 = vpack.c.b16 %v901, %v899
    %v964 = vpack.c.b16 %v904, %v902
    %v965 = vpack.c.b16 %v905, %v903
    %v966 = vpack.c.b16 %v908, %v906
    %v967 = vpack.c.b16 %v909, %v907
    %v968 = vpack.c.b16 %v912, %v910
    %v969 = vpack.c.b16 %v913, %v911
    %v970 = vpack.c.b16 %v916, %v914
    %v971 = vpack.c.b16 %v917, %v915
    %v972 = vpack.c.b16 %v920, %v918
    %v973 = vpack.c.b16 %v921, %v919
    %v974 = vpack.c.b16 %v924, %v922
    %v975 = vpack.c.b16 %v925, %v923
    %v976 = vpack.c.b16 %v928, %v926
    %v977 = vpack.c.b16 %v929, %v927
    %v978 = vpack.c.b16 %v932, %v930
    %v979 = vpack.c.b16 %v933, %v931
    %v980 = vpack.c.b16 %v936, %v934
    %v981 = vpack.c.b16 %v937, %v935
    %v982 = vpack.c.b16 %v940, %v938
    %v983 = vpack.c.b16 %v941, %v939
    %v984 = vpack.c.b16 %v944, %v942
    %v985 = vpack.c.b16 %v945, %v943
    %v986 = vpack.c.b16 %v948, %v946
    %v987 = vpack.c.b16 %v949, %v947
    %v988 = vpack.c.b16 %v952, %v950
    %v989 = vpack.c.b16 %v953, %v951
    %v990 = vpack.c.b16 %v956, %v954
    %v991 = vpack.c.b16 %v957, %v955
    %v992 = vpack.c.b16 %v960, %v958
    %v993 = vpack.c.b16 %v961, %v959
    %1026 = vmatpush.bf16.msra.mxu0 %v976
    %1027 = vmatpush.bf16.msra.mxu0 %v974
    %1028 = vmatpush.bf16.msra.mxu0 %v972
    %1029 = vmatpush.bf16.msra.mxu0 %v970
    %1030 = vmatpush.bf16.msra.mxu0 %v968
    %1031 = vmatpush.bf16.msra.mxu0 %v966
    %1032 = vmatpush.bf16.msra.mxu0 %v964
    %1033 = vmatpush.bf16.msra.mxu0 %v962
    %1034 = vmatmul.bf16.gmra.mxu0 %v796
    %v1035 = vpop.f32.mrf.mxu0
    %v1036 = vadd.f32 %v862, %v1035
    %v1037 = vpop.f32.mrf.mxu0
    %v1038 = vadd.f32 %v862, %v1037
    %1039 = vmatmul.bf16.gmra.mxu0 %v798
    %v1040 = vpop.f32.mrf.mxu0
    %v1041 = vadd.f32 %v862, %v1040
    %v1042 = vpop.f32.mrf.mxu0
    %v1043 = vadd.f32 %v862, %v1042
    %1044 = vmatmul.bf16.gmra.mxu0 %v800
    %v1045 = vpop.f32.mrf.mxu0
    %v1046 = vadd.f32 %v862, %v1045
    %v1047 = vpop.f32.mrf.mxu0
    %v1048 = vadd.f32 %v862, %v1047
    %1049 = vmatmul.bf16.gmra.mxu0 %v802
    %v1050 = vpop.f32.mrf.mxu0
    %v1051 = vadd.f32 %v862, %v1050
    %v1052 = vpop.f32.mrf.mxu0
    %v1053 = vadd.f32 %v862, %v1052
    %1054 = vmatmul.bf16.gmra.mxu0 %v804
    %v1055 = vpop.f32.mrf.mxu0
    %v1056 = vadd.f32 %v862, %v1055
    %v1057 = vpop.f32.mrf.mxu0
    %v1058 = vadd.f32 %v862, %v1057
    %1059 = vmatmul.bf16.gmra.mxu0 %v806
    %v1060 = vpop.f32.mrf.mxu0
    %v1061 = vadd.f32 %v862, %v1060
    %v1062 = vpop.f32.mrf.mxu0
    %v1063 = vadd.f32 %v862, %v1062
    %1064 = vmatmul.bf16.gmra.mxu0 %v808
    %v1065 = vpop.f32.mrf.mxu0
    %v1066 = vadd.f32 %v862, %v1065
    %v1067 = vpop.f32.mrf.mxu0
    %v1068 = vadd.f32 %v862, %v1067
    %1069 = vmatmul.bf16.gmra.mxu0 %v810
    %v1070 = vpop.f32.mrf.mxu0
    %v1071 = vadd.f32 %v862, %v1070
    %v1072 = vpop.f32.mrf.mxu0
    %v1073 = vadd.f32 %v862, %v1072
    %1074 = vmatmul.bf16.gmra.mxu0 %v812
    %v1075 = vpop.f32.mrf.mxu0
    %v1076 = vadd.f32 %v862, %v1075
    %v1077 = vpop.f32.mrf.mxu0
    %v1078 = vadd.f32 %v862, %v1077
    %1079 = vmatmul.bf16.gmra.mxu0 %v814
    %v1080 = vpop.f32.mrf.mxu0
    %v1081 = vadd.f32 %v862, %v1080
    %v1082 = vpop.f32.mrf.mxu0
    %v1083 = vadd.f32 %v862, %v1082
    %1084 = vmatmul.bf16.gmra.mxu0 %v816
    %v1085 = vpop.f32.mrf.mxu0
    %v1086 = vadd.f32 %v862, %v1085
    %v1087 = vpop.f32.mrf.mxu0
    %v1088 = vadd.f32 %v862, %v1087
    %1089 = vmatmul.bf16.gmra.mxu0 %v818
    %v1090 = vpop.f32.mrf.mxu0
    %v1091 = vadd.f32 %v862, %v1090
    %v1092 = vpop.f32.mrf.mxu0
    %v1093 = vadd.f32 %v862, %v1092
    %1094 = vmatmul.bf16.gmra.mxu0 %v820
    %v1095 = vpop.f32.mrf.mxu0
    %v1096 = vadd.f32 %v862, %v1095
    %v1097 = vpop.f32.mrf.mxu0
    %v1098 = vadd.f32 %v862, %v1097
    %1099 = vmatmul.bf16.gmra.mxu0 %v822
    %v1100 = vpop.f32.mrf.mxu0
    %v1101 = vadd.f32 %v862, %v1100
    %v1102 = vpop.f32.mrf.mxu0
    %v1103 = vadd.f32 %v862, %v1102
    %1104 = vmatmul.bf16.gmra.mxu0 %v824
    %v1105 = vpop.f32.mrf.mxu0
    %v1106 = vadd.f32 %v862, %v1105
    %v1107 = vpop.f32.mrf.mxu0
    %v1108 = vadd.f32 %v862, %v1107
    %1109 = vmatmul.bf16.gmra.mxu0 %v826
    %v1110 = vpop.f32.mrf.mxu0
    %v1111 = vadd.f32 %v862, %v1110
    %v1112 = vpop.f32.mrf.mxu0
    %v1113 = vadd.f32 %v862, %v1112
    %1114 = vdwg.mxu0
    %1115 = vmatpush.bf16.msra.mxu0 %v992
    %1116 = vmatpush.bf16.msra.mxu0 %v990
    %1117 = vmatpush.bf16.msra.mxu0 %v988
    %1118 = vmatpush.bf16.msra.mxu0 %v986
    %1119 = vmatpush.bf16.msra.mxu0 %v984
    %1120 = vmatpush.bf16.msra.mxu0 %v982
    %1121 = vmatpush.bf16.msra.mxu0 %v980
    %1122 = vmatpush.bf16.msra.mxu0 %v978
    %1123 = vmatmul.bf16.gmra.mxu0 %v797
    %v1124 = vpop.f32.mrf.mxu0
    %v1125 = vadd.f32 %v1036, %v1124
    %v1126 = vpop.f32.mrf.mxu0
    %v1127 = vadd.f32 %v1038, %v1126
    %1128 = vmatmul.bf16.gmra.mxu0 %v799
    %v1129 = vpop.f32.mrf.mxu0
    %v1130 = vadd.f32 %v1041, %v1129
    %v1131 = vpop.f32.mrf.mxu0
    %v1132 = vadd.f32 %v1043, %v1131
    %1133 = vmatmul.bf16.gmra.mxu0 %v801
    %v1134 = vpop.f32.mrf.mxu0
    %v1135 = vadd.f32 %v1046, %v1134
    %v1136 = vpop.f32.mrf.mxu0
    %v1137 = vadd.f32 %v1048, %v1136
    %1138 = vmatmul.bf16.gmra.mxu0 %v803
    %v1139 = vpop.f32.mrf.mxu0
    %v1140 = vadd.f32 %v1051, %v1139
    %v1141 = vpop.f32.mrf.mxu0
    %v1142 = vadd.f32 %v1053, %v1141
    %1143 = vmatmul.bf16.gmra.mxu0 %v805
    %v1144 = vpop.f32.mrf.mxu0
    %v1145 = vadd.f32 %v1056, %v1144
    %v1146 = vpop.f32.mrf.mxu0
    %v1147 = vadd.f32 %v1058, %v1146
    %1148 = vmatmul.bf16.gmra.mxu0 %v807
    %v1149 = vpop.f32.mrf.mxu0
    %v1150 = vadd.f32 %v1061, %v1149
    %v1151 = vpop.f32.mrf.mxu0
    %v1152 = vadd.f32 %v1063, %v1151
    %1153 = vmatmul.bf16.gmra.mxu0 %v809
    %v1154 = vpop.f32.mrf.mxu0
    %v1155 = vadd.f32 %v1066, %v1154
    %v1156 = vpop.f32.mrf.mxu0
    %v1157 = vadd.f32 %v1068, %v1156
    %1158 = vmatmul.bf16.gmra.mxu0 %v811
    %v1159 = vpop.f32.mrf.mxu0
    %v1160 = vadd.f32 %v1071, %v1159
    %v1161 = vpop.f32.mrf.mxu0
    %v1162 = vadd.f32 %v1073, %v1161
    %1163 = vmatmul.bf16.gmra.mxu0 %v813
    %v1164 = vpop.f32.mrf.mxu0
    %v1165 = vadd.f32 %v1076, %v1164
    %v1166 = vpop.f32.mrf.mxu0
    %v1167 = vadd.f32 %v1078, %v1166
    %1168 = vmatmul.bf16.gmra.mxu0 %v815
    %v1169 = vpop.f32.mrf.mxu0
    %v1170 = vadd.f32 %v1081, %v1169
    %v1171 = vpop.f32.mrf.mxu0
    %v1172 = vadd.f32 %v1083, %v1171
    %1173 = vmatmul.bf16.gmra.mxu0 %v817
    %v1174 = vpop.f32.mrf.mxu0
    %v1175 = vadd.f32 %v1086, %v1174
    %v1176 = vpop.f32.mrf.mxu0
    %v1177 = vadd.f32 %v1088, %v1176
    %1178 = vmatmul.bf16.gmra.mxu0 %v819
    %v1179 = vpop.f32.mrf.mxu0
    %v1180 = vadd.f32 %v1091, %v1179
    %v1181 = vpop.f32.mrf.mxu0
    %v1182 = vadd.f32 %v1093, %v1181
    %1183 = vmatmul.bf16.gmra.mxu0 %v821
    %v1184 = vpop.f32.mrf.mxu0
    %v1185 = vadd.f32 %v1096, %v1184
    %v1186 = vpop.f32.mrf.mxu0
    %v1187 = vadd.f32 %v1098, %v1186
    %1188 = vmatmul.bf16.gmra.mxu0 %v823
    %v1189 = vpop.f32.mrf.mxu0
    %v1190 = vadd.f32 %v1101, %v1189
    %v1191 = vpop.f32.mrf.mxu0
    %v1192 = vadd.f32 %v1103, %v1191
    %1193 = vmatmul.bf16.gmra.mxu0 %v825
    %v1194 = vpop.f32.mrf.mxu0
    %v1195 = vadd.f32 %v1106, %v1194
    %v1196 = vpop.f32.mrf.mxu0
    %v1197 = vadd.f32 %v1108, %v1196
    %1198 = vmatmul.bf16.gmra.mxu0 %v827
    %v1199 = vpop.f32.mrf.mxu0
    %v1200 = vadd.f32 %v1111, %v1199
    %v1201 = vpop.f32.mrf.mxu0
    %v1202 = vadd.f32 %v1113, %v1201
    %1203 = vdwg.mxu0
    %1204 = vmatpush.bf16.msra.mxu0 %v977
    %1205 = vmatpush.bf16.msra.mxu0 %v975
    %1206 = vmatpush.bf16.msra.mxu0 %v973
    %1207 = vmatpush.bf16.msra.mxu0 %v971
    %1208 = vmatpush.bf16.msra.mxu0 %v969
    %1209 = vmatpush.bf16.msra.mxu0 %v967
    %1210 = vmatpush.bf16.msra.mxu0 %v965
    %1211 = vmatpush.bf16.msra.mxu0 %v963
    %1212 = vmatmul.bf16.gmra.mxu0 %v796
    %v1213 = vpop.f32.mrf.mxu0
    %v1214 = vadd.f32 %v863, %v1213
    %v1215 = vpop.f32.mrf.mxu0
    %v1216 = vadd.f32 %v863, %v1215
    %1217 = vmatmul.bf16.gmra.mxu0 %v798
    %v1218 = vpop.f32.mrf.mxu0
    %v1219 = vadd.f32 %v863, %v1218
    %v1220 = vpop.f32.mrf.mxu0
    %v1221 = vadd.f32 %v863, %v1220
    %1222 = vmatmul.bf16.gmra.mxu0 %v800
    %v1223 = vpop.f32.mrf.mxu0
    %v1224 = vadd.f32 %v863, %v1223
    %v1225 = vpop.f32.mrf.mxu0
    %v1226 = vadd.f32 %v863, %v1225
    %1227 = vmatmul.bf16.gmra.mxu0 %v802
    %v1228 = vpop.f32.mrf.mxu0
    %v1229 = vadd.f32 %v863, %v1228
    %v1230 = vpop.f32.mrf.mxu0
    %v1231 = vadd.f32 %v863, %v1230
    %1232 = vmatmul.bf16.gmra.mxu0 %v804
    %v1233 = vpop.f32.mrf.mxu0
    %v1234 = vadd.f32 %v863, %v1233
    %v1235 = vpop.f32.mrf.mxu0
    %v1236 = vadd.f32 %v863, %v1235
    %1237 = vmatmul.bf16.gmra.mxu0 %v806
    %v1238 = vpop.f32.mrf.mxu0
    %v1239 = vadd.f32 %v863, %v1238
    %v1240 = vpop.f32.mrf.mxu0
    %v1241 = vadd.f32 %v863, %v1240
    %1242 = vmatmul.bf16.gmra.mxu0 %v808
    %v1243 = vpop.f32.mrf.mxu0
    %v1244 = vadd.f32 %v863, %v1243
    %v1245 = vpop.f32.mrf.mxu0
    %v1246 = vadd.f32 %v863, %v1245
    %1247 = vmatmul.bf16.gmra.mxu0 %v810
    %v1248 = vpop.f32.mrf.mxu0
    %v1249 = vadd.f32 %v863, %v1248
    %v1250 = vpop.f32.mrf.mxu0
    %v1251 = vadd.f32 %v863, %v1250
    %1252 = vmatmul.bf16.gmra.mxu0 %v812
    %v1253 = vpop.f32.mrf.mxu0
    %v1254 = vadd.f32 %v863, %v1253
    %v1255 = vpop.f32.mrf.mxu0
    %v1256 = vadd.f32 %v863, %v1255
    %1257 = vmatmul.bf16.gmra.mxu0 %v814
    %v1258 = vpop.f32.mrf.mxu0
    %v1259 = vadd.f32 %v863, %v1258
    %v1260 = vpop.f32.mrf.mxu0
    %v1261 = vadd.f32 %v863, %v1260
    %1262 = vmatmul.bf16.gmra.mxu0 %v816
    %v1263 = vpop.f32.mrf.mxu0
    %v1264 = vadd.f32 %v863, %v1263
    %v1265 = vpop.f32.mrf.mxu0
    %v1266 = vadd.f32 %v863, %v1265
    %1267 = vmatmul.bf16.gmra.mxu0 %v818
    %v1268 = vpop.f32.mrf.mxu0
    %v1269 = vadd.f32 %v863, %v1268
    %v1270 = vpop.f32.mrf.mxu0
    %v1271 = vadd.f32 %v863, %v1270
    %1272 = vmatmul.bf16.gmra.mxu0 %v820
    %v1273 = vpop.f32.mrf.mxu0
    %v1274 = vadd.f32 %v863, %v1273
    %v1275 = vpop.f32.mrf.mxu0
    %v1276 = vadd.f32 %v863, %v1275
    %1277 = vmatmul.bf16.gmra.mxu0 %v822
    %v1278 = vpop.f32.mrf.mxu0
    %v1279 = vadd.f32 %v863, %v1278
    %v1280 = vpop.f32.mrf.mxu0
    %v1281 = vadd.f32 %v863, %v1280
    %1282 = vmatmul.bf16.gmra.mxu0 %v824
    %v1283 = vpop.f32.mrf.mxu0
    %v1284 = vadd.f32 %v863, %v1283
    %v1285 = vpop.f32.mrf.mxu0
    %v1286 = vadd.f32 %v863, %v1285
    %1287 = vmatmul.bf16.gmra.mxu0 %v826
    %v1288 = vpop.f32.mrf.mxu0
    %v1289 = vadd.f32 %v863, %v1288
    %v1290 = vpop.f32.mrf.mxu0
    %v1291 = vadd.f32 %v863, %v1290
    %1292 = vdwg.mxu0
    %1293 = vmatpush.bf16.msra.mxu0 %v993
    %1294 = vmatpush.bf16.msra.mxu0 %v991
    %1295 = vmatpush.bf16.msra.mxu0 %v989
    %1296 = vmatpush.bf16.msra.mxu0 %v987
    %1297 = vmatpush.bf16.msra.mxu0 %v985
    %1298 = vmatpush.bf16.msra.mxu0 %v983
    %1299 = vmatpush.bf16.msra.mxu0 %v981
    %1300 = vmatpush.bf16.msra.mxu0 %v979
    %1301 = vmatmul.bf16.gmra.mxu0 %v797
    %v1302 = vpop.f32.mrf.mxu0
    %v1303 = vadd.f32 %v1214, %v1302
    %v1304 = vpop.f32.mrf.mxu0
    %v1305 = vadd.f32 %v1216, %v1304
    %1306 = vmatmul.bf16.gmra.mxu0 %v799
    %v1307 = vpop.f32.mrf.mxu0
    %v1308 = vadd.f32 %v1219, %v1307
    %v1309 = vpop.f32.mrf.mxu0
    %v1310 = vadd.f32 %v1221, %v1309
    %1311 = vmatmul.bf16.gmra.mxu0 %v801
    %v1312 = vpop.f32.mrf.mxu0
    %v1313 = vadd.f32 %v1224, %v1312
    %v1314 = vpop.f32.mrf.mxu0
    %v1315 = vadd.f32 %v1226, %v1314
    %1316 = vmatmul.bf16.gmra.mxu0 %v803
    %v1317 = vpop.f32.mrf.mxu0
    %v1318 = vadd.f32 %v1229, %v1317
    %v1319 = vpop.f32.mrf.mxu0
    %v1320 = vadd.f32 %v1231, %v1319
    %1321 = vmatmul.bf16.gmra.mxu0 %v805
    %v1322 = vpop.f32.mrf.mxu0
    %v1323 = vadd.f32 %v1234, %v1322
    %v1324 = vpop.f32.mrf.mxu0
    %v1325 = vadd.f32 %v1236, %v1324
    %1326 = vmatmul.bf16.gmra.mxu0 %v807
    %v1327 = vpop.f32.mrf.mxu0
    %v1328 = vadd.f32 %v1239, %v1327
    %v1329 = vpop.f32.mrf.mxu0
    %v1330 = vadd.f32 %v1241, %v1329
    %1331 = vmatmul.bf16.gmra.mxu0 %v809
    %v1332 = vpop.f32.mrf.mxu0
    %v1333 = vadd.f32 %v1244, %v1332
    %v1334 = vpop.f32.mrf.mxu0
    %v1335 = vadd.f32 %v1246, %v1334
    %1336 = vmatmul.bf16.gmra.mxu0 %v811
    %v1337 = vpop.f32.mrf.mxu0
    %v1338 = vadd.f32 %v1249, %v1337
    %v1339 = vpop.f32.mrf.mxu0
    %v1340 = vadd.f32 %v1251, %v1339
    %1341 = vmatmul.bf16.gmra.mxu0 %v813
    %v1342 = vpop.f32.mrf.mxu0
    %v1343 = vadd.f32 %v1254, %v1342
    %v1344 = vpop.f32.mrf.mxu0
    %v1345 = vadd.f32 %v1256, %v1344
    %1346 = vmatmul.bf16.gmra.mxu0 %v815
    %v1347 = vpop.f32.mrf.mxu0
    %v1348 = vadd.f32 %v1259, %v1347
    %v1349 = vpop.f32.mrf.mxu0
    %v1350 = vadd.f32 %v1261, %v1349
    %1351 = vmatmul.bf16.gmra.mxu0 %v817
    %v1352 = vpop.f32.mrf.mxu0
    %v1353 = vadd.f32 %v1264, %v1352
    %v1354 = vpop.f32.mrf.mxu0
    %v1355 = vadd.f32 %v1266, %v1354
    %1356 = vmatmul.bf16.gmra.mxu0 %v819
    %v1357 = vpop.f32.mrf.mxu0
    %v1358 = vadd.f32 %v1269, %v1357
    %v1359 = vpop.f32.mrf.mxu0
    %v1360 = vadd.f32 %v1271, %v1359
    %1361 = vmatmul.bf16.gmra.mxu0 %v821
    %v1362 = vpop.f32.mrf.mxu0
    %v1363 = vadd.f32 %v1274, %v1362
    %v1364 = vpop.f32.mrf.mxu0
    %v1365 = vadd.f32 %v1276, %v1364
    %1366 = vmatmul.bf16.gmra.mxu0 %v823
    %v1367 = vpop.f32.mrf.mxu0
    %v1368 = vadd.f32 %v1279, %v1367
    %v1369 = vpop.f32.mrf.mxu0
    %v1370 = vadd.f32 %v1281, %v1369
    %1371 = vmatmul.bf16.gmra.mxu0 %v825
    %v1372 = vpop.f32.mrf.mxu0
    %v1373 = vadd.f32 %v1284, %v1372
    %v1374 = vpop.f32.mrf.mxu0
    %v1375 = vadd.f32 %v1286, %v1374
    %1376 = vmatmul.bf16.gmra.mxu0 %v827
    %v1377 = vpop.f32.mrf.mxu0
    %v1378 = vadd.f32 %v1289, %v1377
    %v1379 = vpop.f32.mrf.mxu0
    %v1380 = vadd.f32 %v1291, %v1379
    %1381 = vdwg.mxu0
    %v1382 = vpack.c.bf16 %v1303, %v1125
    %v1383 = vpack.c.bf16 %v1305, %v1127
    %v1384 = vpack.c.bf16 %v1308, %v1130
    %v1385 = vpack.c.bf16 %v1310, %v1132
    %v1386 = vpack.c.bf16 %v1313, %v1135
    %v1387 = vpack.c.bf16 %v1315, %v1137
    %v1388 = vpack.c.bf16 %v1318, %v1140
    %v1389 = vpack.c.bf16 %v1320, %v1142
    %v1390 = vpack.c.bf16 %v1323, %v1145
    %v1391 = vpack.c.bf16 %v1325, %v1147
    %v1392 = vpack.c.bf16 %v1328, %v1150
    %v1393 = vpack.c.bf16 %v1330, %v1152
    %v1394 = vpack.c.bf16 %v1333, %v1155
    %v1395 = vpack.c.bf16 %v1335, %v1157
    %v1396 = vpack.c.bf16 %v1338, %v1160
    %v1397 = vpack.c.bf16 %v1340, %v1162
    %v1398 = vpack.c.bf16 %v1343, %v1165
    %v1399 = vpack.c.bf16 %v1345, %v1167
    %v1400 = vpack.c.bf16 %v1348, %v1170
    %v1401 = vpack.c.bf16 %v1350, %v1172
    %v1402 = vpack.c.bf16 %v1353, %v1175
    %v1403 = vpack.c.bf16 %v1355, %v1177
    %v1404 = vpack.c.bf16 %v1358, %v1180
    %v1405 = vpack.c.bf16 %v1360, %v1182
    %v1406 = vpack.c.bf16 %v1363, %v1185
    %v1407 = vpack.c.bf16 %v1365, %v1187
    %v1408 = vpack.c.bf16 %v1368, %v1190
    %v1409 = vpack.c.bf16 %v1370, %v1192
    %v1410 = vpack.c.bf16 %v1373, %v1195
    %v1411 = vpack.c.bf16 %v1375, %v1197
    %v1412 = vpack.c.bf16 %v1378, %v1200
    %v1413 = vpack.c.bf16 %v1380, %v1202
    %1414 = vst [vmem:[#allocation10] sm:$0xff] %v1382
    %1415 = vst [vmem:[#allocation10 + $0x8] sm:$0xff] %v1383
    %1416 = vst [vmem:[#allocation10 + $0x10] sm:$0xff] %v1384
    %1417 = vst [vmem:[#allocation10 + $0x18] sm:$0xff] %v1385
    %1418 = vst [vmem:[#allocation10 + $0x20] sm:$0xff] %v1386
    %1419 = vst [vmem:[#allocation10 + $0x28] sm:$0xff] %v1387
    %1420 = vst [vmem:[#allocation10 + $0x30] sm:$0xff] %v1388
    %1421 = vst [vmem:[#allocation10 + $0x38] sm:$0xff] %v1389
    %1422 = vst [vmem:[#allocation10 + $0x40] sm:$0xff] %v1390
    %1423 = vst [vmem:[#allocation10 + $0x48] sm:$0xff] %v1391
    %1424 = vst [vmem:[#allocation10 + $0x50] sm:$0xff] %v1392
    %1425 = vst [vmem:[#allocation10 + $0x58] sm:$0xff] %v1393
    %1426 = vst [vmem:[#allocation10 + $0x60] sm:$0xff] %v1394
    %1427 = vst [vmem:[#allocation10 + $0x68] sm:$0xff] %v1395
    %1428 = vst [vmem:[#allocation10 + $0x70] sm:$0xff] %v1396
    %1429 = vst [vmem:[#allocation10 + $0x78] sm:$0xff] %v1397
    %1430 = vst [vmem:[#allocation10 + $0x80] sm:$0xff] %v1398
    %1431 = vst [vmem:[#allocation10 + $0x88] sm:$0xff] %v1399
    %1432 = vst [vmem:[#allocation10 + $0x90] sm:$0xff] %v1400
    %1433 = vst [vmem:[#allocation10 + $0x98] sm:$0xff] %v1401
    %1434 = vst [vmem:[#allocation10 + $0xa0] sm:$0xff] %v1402
    %1435 = vst [vmem:[#allocation10 + $0xa8] sm:$0xff] %v1403
    %1436 = vst [vmem:[#allocation10 + $0xb0] sm:$0xff] %v1404
    %1437 = vst [vmem:[#allocation10 + $0xb8] sm:$0xff] %v1405
    %1438 = vst [vmem:[#allocation10 + $0xc0] sm:$0xff] %v1406
    %1439 = vst [vmem:[#allocation10 + $0xc8] sm:$0xff] %v1407
    %1440 = vst [vmem:[#allocation10 + $0xd0] sm:$0xff] %v1408
    %1441 = vst [vmem:[#allocation10 + $0xd8] sm:$0xff] %v1409
    %1442 = vst [vmem:[#allocation10 + $0xe0] sm:$0xff] %v1410
    %1443 = vst [vmem:[#allocation10 + $0xe8] sm:$0xff] %v1411
    %1444 = vst [vmem:[#allocation10 + $0xf0] sm:$0xff] %v1412
    %1445 = vst [vmem:[#allocation10 + $0xf8] sm:$0xff] %v1413
    // Predicated region
    $region38: #{tpu_custom_call.1} parent=1 // pred_check
      _
    $region39: #{tpu_custom_call.1} parent=1 // pred_check_branch
      %1447 = sbr.rel (0) target = $region41
    $region40: #{tpu_custom_call.1} parent=1 // pred_region
      %1449 = vsyncadd [#allocation4], 0
      %s1450 = sshll.u32 [#allocation10], 4
      %s1451 = int_to_ptr.vmem [resolvable:$true] %s1450
      %s1452 = sshll.u32 %s5, 4
      %s1453 = int_to_ptr.hbm [resolvable:$true] %s1452
      %1458 = dma.vmem_to_hbm [thread:$0]  %s1451, 4096, %s1453, [#allocation4], 128, 128, 8
    $region41: #{tpu_custom_call.1} parent=1 // pred_fallthru
      _
    // Predicated region
    $region42: #{tpu_custom_call.1} parent=1 // pred_check
      _
    $region43: #{tpu_custom_call.1} parent=1 // pred_check_branch
      %1460 = sbr.rel (0) target = $region45
    $region44: #{tpu_custom_call.1} parent=1 // pred_region
      %1462 = dma.done [#allocation4], 4096
    $region45: #{tpu_custom_call.1} parent=1 // pred_fallthru
      _
    %1463 = vsyncpa [#allocation3], 1
    %1464 = vsyncpa [#allocation6], 1
    %1465 = vsyncpa [#allocation9], 1
    %1466 = vsyncpa [#allocation4], 1

</llo_original>
